<compile_context>
chip_gen: v7x
topology: tpu7x:2x2x1
jax: 0.10.0
libtpu: 0.0.40
codegen_flags: <defaults>
</compile_context>

<pallas_src>
import jax
import jax.numpy as jnp
from jax.experimental import pallas as pl
from jax.experimental.pallas import tpu as pltpu

_LANES = 128


def _pad_to(n, m):
    return ((n + m - 1) // m) * m


# ----------------------------------------------------------------------------
# Fused forward kernel (everything stays in VMEM; zero HBM round-trips).
# ----------------------------------------------------------------------------
def _make_forward_kernel(num_layers, w_layout, b_index):
    """w_layout: name -> (row_off, rows, cols); b_index: name -> (row_off, cols)."""

    def kernel(x_ref, adj_ref, w_ref, b_ref, out_ref):
        def weight(name):
            r0, r, c = w_layout[name]
            return w_ref[r0:r0 + r, 0:c]                 # bf16 [in, out]

        def bias(name):
            r0, c = b_index[name]
            return b_ref[r0:r0 + 1, 0:c]                 # f32 [1, out]

        def mxu(a, w):
            # Single-pass bf16 MXU matmul, f32 accumulation.
            return jnp.dot(a.astype(jnp.bfloat16), w,
                           preferred_element_type=jnp.float32)

        def linear(a, name):
            return mxu(a, weight(name)) + bias(name)

        # --- MLP(input_dim -> H -> H -> 2H) ----------------------------------
        # TODO(synk): PyG MLP defaults include BatchNorm between hidden layers;
        # omitted here (identity at eval with default running stats).
        h = x_ref[...]
        h = jnp.maximum(linear(h, "mlp0"), 0.0)
        h = jnp.maximum(linear(h, "mlp1"), 0.0)
        h = linear(h, "mlp2")                            # plain last layer

        # --- Metapath GNN stack (shared weights -> computed ONCE) -------------
        emb = h
        for i in range(num_layers):
            a = adj_ref[i]                               # [N, N] bf16 counts
            # Reassociated aggregation: A @ (emb @ w_l); keeps the NxN dot's
            # contraction dim at H instead of c_in (=2H on layer 0).
            ew = mxu(emb, weight(f"l{i}_wl"))            # [N, H] f32
            neig = jnp.dot(a, ew.astype(jnp.bfloat16),
                           preferred_element_type=jnp.float32)
            sn = mxu(emb, weight(f"l{i}_wsn"))           # emb @ (w_1 + w_0)
            emb = jnp.maximum(neig + sn + bias(f"l{i}"), 0.0)
            # F.dropout(p=0.5) is identity in eval mode.

        # --- Head: concat of identical path embeddings folded into fc1_eff ----
        z = jnp.maximum(linear(emb, "fc1"), 0.0)
        z = linear(z, "fc2")
        m = jnp.max(z, axis=1, keepdims=True)
        e = jnp.exp(z - m)
        out_ref[...] = (z - m) - jnp.log(jnp.sum(e, axis=1, keepdims=True))

    return kernel


def _full_block_spec(arr):
    zero = (0,) * arr.ndim
    return pl.BlockSpec(arr.shape, lambda i, zero=zero: zero)


def metapath_gnn_forward(x, adjacency, w_slab, b_slab, w_layout, b_index,
                         num_layers, out_dim):
    """x: [N, D_in] f32, adjacency: [L, N, N] bf16 -> log-probs [N, out_dim]."""
    n = x.shape[0]
    inputs = [x, adjacency, w_slab, b_slab]
    # TODO(synk): for graphs too large for VMEM, row-tile nodes (grid over node
    # tiles, "parallel" semantics; size the adjacency row slab per generation:
    # ~<32 MiB double-buffered on v7x's 64 MiB VMEM).
    return pl.pallas_call(
        _make_forward_kernel(num_layers, w_layout, b_index),
        out_shape=jax.ShapeDtypeStruct((n, out_dim), jnp.float32),
        grid=(1,),
        in_specs=[_full_block_spec(a) for a in inputs],
        out_specs=pl.BlockSpec((n, out_dim), lambda i: (0, 0)),
        compiler_params=pltpu.CompilerParams(dimension_semantics=("arbitrary",)),
    )(*inputs)


# ----------------------------------------------------------------------------
# Host-side glue.
# ----------------------------------------------------------------------------
def build_adjacency(edge_index, edge_type, relation_indices, num_nodes):
    """Densify edge list -> [L, N, N] bf16 edge-count matrices (exact: counts small)."""
    src, dst = edge_index[0], edge_index[1]
    adjs = []
    for r in relation_indices:
        w = (edge_type == r).astype(jnp.float32)
        a = jnp.zeros((num_nodes, num_nodes), jnp.float32).at[src, dst].add(w)
        adjs.append(a)
    return jnp.stack(adjs).astype(jnp.bfloat16)          # [L, N, N]


def pack_params(params, num_paths, hidden_dim):
    """Fold algebraic identities and pack all weights/biases into two slabs."""
    H = hidden_dim

    # Fold concat-of-identical-embeddings into fc1 (sum of row blocks).
    fc1_w, fc1_b = params["fc1"]
    fc1_eff = fc1_w[0:H]
    for j in range(1, num_paths):
        fc1_eff = fc1_eff + fc1_w[j * H:(j + 1) * H]

    weights = [("mlp0", params["mlp"][0][0]),
               ("mlp1", params["mlp"][1][0]),
               ("mlp2", params["mlp"][2][0])]
    biases = [("mlp0", params["mlp"][0][1]),
              ("mlp1", params["mlp"][1][1]),
              ("mlp2", params["mlp"][2][1])]
    for li, (wl, bl, w1, b1, w0, b0) in enumerate(params["layers"]):
        weights.append((f"l{li}_wl", wl))
        weights.append((f"l{li}_wsn", w1 + w0))          # skip + node fold
        biases.append((f"l{li}", bl + b1 + b0))          # bias fold
    weights.append(("fc1", fc1_eff))
    biases.append(("fc1", fc1_b))
    weights.append(("fc2", params["fc2"][0]))
    biases.append(("fc2", params["fc2"][1]))

    # Weight slab: bf16, rows padded to 16 (bf16 sublane tile), 128 lanes.
    w_layout = {}
    off = 0
    for name, a in weights:
        w_layout[name] = (off, a.shape[0], a.shape[1])
        off += _pad_to(a.shape[0], 16)
    w_rows = _pad_to(off, 16)
    w_slab = jnp.zeros((w_rows, _LANES), jnp.float32)
    for name, a in weights:
        r0, r, c = w_layout[name]
        w_slab = w_slab.at[r0:r0 + r, 0:c].set(a)
    w_slab = w_slab.astype(jnp.bfloat16)

    # Bias slab: f32, one bias per 8-row slot (8-aligned slice starts).
    b_index = {}
    b_rows = _pad_to(8 * len(biases), 8)
    b_slab = jnp.zeros((b_rows, _LANES), jnp.float32)
    for i, (name, b) in enumerate(biases):
        b_index[name] = (8 * i, b.shape[1])
        b_slab = b_slab.at[8 * i:8 * i + 1, 0:b.shape[1]].set(b)

    return w_slab, b_slab, w_layout, b_index


# ----------------------------------------------------------------------------
# Pure-JAX reference mirroring the torch forward (edge-list aggregation).
# ----------------------------------------------------------------------------
def reference_forward(params, x, edge_index, edge_type, relations, num_paths):
    def lin(v, wb):
        return v @ wb[0] + wb[1]

    h = jax.nn.relu(lin(x, params["mlp"][0]))
    h = jax.nn.relu(lin(h, params["mlp"][1]))
    h = lin(h, params["mlp"][2])

    src, dst = edge_index[0], edge_index[1]
    n = x.shape[0]
    embs = []
    for _ in range(num_paths):
        emb = h
        for i, r in enumerate(relations):
            wl, bl, w1, b1, w0, b0 = params["layers"][i]
            sel = (edge_type == r).astype(emb.dtype)[:, None]
            # flow='target_to_source': message = emb[dst], aggregate at src.
            msg = emb[dst] * sel
            agg = jnp.zeros((n, emb.shape[1]), emb.dtype).at[src].add(msg)
            out = (agg @ wl + bl) + (emb @ w1 + b1) + (emb @ w0 + b0)
            emb = jax.nn.relu(out)
        embs.append(emb)
    cat = jnp.concatenate(embs, axis=1)
    z = jax.nn.relu(lin(cat, params["fc1"]))
    z = lin(z, params["fc2"])
    return jax.nn.log_softmax(z, axis=1)


def _linear_params(key, fan_in, fan_out):
    kw, kb = jax.random.split(key)
    bound = 1.0 / (fan_in ** 0.5)
    w = jax.random.uniform(kw, (fan_in, fan_out), minval=-bound, maxval=bound,
                           dtype=jnp.float32)
    b = jax.random.uniform(kb, (1, fan_out), minval=-bound, maxval=bound,
                           dtype=jnp.float32)
    return w, b


if __name__ == "__main__":
    num_nodes = 64
    input_dim = 16
    hidden_dim = 32
    output_dim = 8
    num_edges = 256
    num_relations = 3
    metapath_list = [[1, 2], [0, 2]]      # only the LAST metatree's layers
    num_paths = len(metapath_list)        # survive in the torch module
    relations = metapath_list[-1]
    num_layers = len(relations)

    key = jax.random.PRNGKey(0)
    keys = jax.random.split(key, 5)

    x = jax.random.normal(keys[0], (num_nodes, input_dim), dtype=jnp.float32)
    src = jax.random.randint(keys[1], (num_edges,), 0, num_nodes, dtype=jnp.int32)
    dst = jax.random.randint(keys[2], (num_edges,), 0, num_nodes, dtype=jnp.int32)
    edge_index = jnp.stack([src, dst])                        # [2, E]
    edge_type = jax.random.randint(keys[3], (num_edges,), 0, num_relations,
                                   dtype=jnp.int32)

    # Parameters (nn.Linear default init), weights stored [in, out].
    pkeys = jax.random.split(keys[4], 5 + num_layers)
    mlp = [
        _linear_params(pkeys[0], input_dim, hidden_dim),
        _linear_params(pkeys[1], hidden_dim, hidden_dim),
        _linear_params(pkeys[2], hidden_dim, 2 * hidden_dim),
    ]
    layers = []
    for i in range(num_layers):
        c_in = 2 * hidden_dim if i == 0 else hidden_dim
        kl, k1, k0 = jax.random.split(pkeys[3 + i], 3)
        wl, bl = _linear_params(kl, c_in, hidden_dim)
        w1, b1 = _linear_params(k1, c_in, hidden_dim)
        w0, b0 = _linear_params(k0, c_in, hidden_dim)
        layers.append((wl, bl, w1, b1, w0, b0))
    fc1 = _linear_params(pkeys[3 + num_layers], hidden_dim * num_paths, hidden_dim)
    fc2 = _linear_params(pkeys[4 + num_layers], hidden_dim, output_dim)
    params = {"mlp": mlp, "layers": layers, "fc1": fc1, "fc2": fc2}

    # Host glue: densify the graph, fold + pack parameters into two slabs.
    adjacency = build_adjacency(edge_index, edge_type, relations, num_nodes)
    w_slab, b_slab, w_layout, b_index = pack_params(params, num_paths, hidden_dim)

    # Run the fused kernel (4 input DMAs: x, adjacency, w_slab, b_slab).
    out = metapath_gnn_forward(x, adjacency, w_slab, b_slab, w_layout, b_index,
                               num_layers, output_dim)
    out = jax.block_until_ready(out)

    # Validate against an accurate f32 edge-list reference.  Kernel uses bf16
    # MXU operands (f32 accumulation), so the tolerance is relaxed vs exact f32.
    with jax.default_matmul_precision("highest"):
        ref = reference_forward(params, x, edge_index, edge_type, relations,
                                num_paths)
    ref = jax.block_until_ready(ref)
    if not jnp.allclose(out, ref, rtol=2e-2, atol=2e-2):
        raise AssertionError(
            f"mismatch: max abs err = {jnp.max(jnp.abs(out - ref))}")

    print("KERNEL_OK")
</pallas_src>

<mosaic_0001>
module attributes {stable_mosaic.version = 11 : i64} {
  func.func @kernel(%arg0: i32, %arg1: memref<64x16xf32, #tpu.memory_space<vmem>>, %arg2: memref<2x64x64xbf16, #tpu.memory_space<vmem>>, %arg3: memref<336x128xbf16, #tpu.memory_space<vmem>>, %arg4: memref<56x128xf32, #tpu.memory_space<vmem>>, %arg5: memref<64x8xf32, #tpu.memory_space<vmem>>) attributes {dimension_semantics = [#tpu.dimension_semantics<arbitrary>], iteration_bounds = array<i64: 1>, scalar_prefetch = 0 : i64, scratch_operands = 0 : i64, tpu.core_type = #tpu.core_type<tc>, window_params = [{pipeline_mode = #tpu.pipeline_mode<synchronous>, transform_indices = @transform_0, window_bounds = array<i64: 64, 16>}, {pipeline_mode = #tpu.pipeline_mode<synchronous>, transform_indices = @transform_1, window_bounds = array<i64: 2, 64, 64>}, {pipeline_mode = #tpu.pipeline_mode<synchronous>, transform_indices = @transform_2, window_bounds = array<i64: 336, 128>}, {pipeline_mode = #tpu.pipeline_mode<synchronous>, transform_indices = @transform_3, window_bounds = array<i64: 56, 128>}, {pipeline_mode = #tpu.pipeline_mode<synchronous>, transform_indices = @transform_4, window_bounds = array<i64: 64, 8>}]} {
    %c0 = arith.constant 0 : index
    %c0_0 = arith.constant 0 : index
    %0 = vector.load %arg1[%c0, %c0_0] : memref<64x16xf32, #tpu.memory_space<vmem>>, vector<64x16xf32>
    %c0_1 = arith.constant 0 : index
    %c0_2 = arith.constant 0 : index
    %1 = vector.load %arg3[%c0_1, %c0_2] : memref<336x128xbf16, #tpu.memory_space<vmem>>, vector<16x32xbf16>
    %2 = arith.truncf %0 : vector<64x16xf32> to vector<64x16xbf16>
    %cst = arith.constant dense<0.000000e+00> : vector<64x32xf32>
    %3 = tpu.matmul %2, %1, %cst {dimension_numbers = #tpu.dot_dimension_numbers<[1], [0], [0], [1], [0, 0, 1, 1], [], []>} : vector<64x16xbf16>, vector<16x32xbf16>, vector<64x32xf32> -> vector<64x32xf32>
    %c0_3 = arith.constant 0 : index
    %c0_4 = arith.constant 0 : index
    %4 = vector.load %arg4[%c0_3, %c0_4] : memref<56x128xf32, #tpu.memory_space<vmem>>, vector<1x32xf32>
    %5 = vector.broadcast %4 : vector<1x32xf32> to vector<64x32xf32>
    %6 = arith.addf %3, %5 : vector<64x32xf32>
    %cst_5 = arith.constant 0.000000e+00 : f32
    %7 = vector.broadcast %cst_5 : f32 to vector<64x32xf32>
    %8 = arith.maximumf %6, %7 : vector<64x32xf32>
    %c16 = arith.constant 16 : index
    %c0_6 = arith.constant 0 : index
    %9 = vector.load %arg3[%c16, %c0_6] : memref<336x128xbf16, #tpu.memory_space<vmem>>, vector<32x32xbf16>
    %10 = arith.truncf %8 : vector<64x32xf32> to vector<64x32xbf16>
    %cst_7 = arith.constant dense<0.000000e+00> : vector<64x32xf32>
    %11 = tpu.matmul %10, %9, %cst_7 {dimension_numbers = #tpu.dot_dimension_numbers<[1], [0], [0], [1], [0, 0, 1, 1], [], []>} : vector<64x32xbf16>, vector<32x32xbf16>, vector<64x32xf32> -> vector<64x32xf32>
    %c8 = arith.constant 8 : index
    %c0_8 = arith.constant 0 : index
    %12 = vector.load %arg4[%c8, %c0_8] : memref<56x128xf32, #tpu.memory_space<vmem>>, vector<1x32xf32>
    %13 = vector.broadcast %12 : vector<1x32xf32> to vector<64x32xf32>
    %14 = arith.addf %11, %13 : vector<64x32xf32>
    %cst_9 = arith.constant 0.000000e+00 : f32
    %15 = vector.broadcast %cst_9 : f32 to vector<64x32xf32>
    %16 = arith.maximumf %14, %15 : vector<64x32xf32>
    %c48 = arith.constant 48 : index
    %c0_10 = arith.constant 0 : index
    %17 = vector.load %arg3[%c48, %c0_10] : memref<336x128xbf16, #tpu.memory_space<vmem>>, vector<32x64xbf16>
    %18 = arith.truncf %16 : vector<64x32xf32> to vector<64x32xbf16>
    %cst_11 = arith.constant dense<0.000000e+00> : vector<64x64xf32>
    %19 = tpu.matmul %18, %17, %cst_11 {dimension_numbers = #tpu.dot_dimension_numbers<[1], [0], [0], [1], [0, 0, 1, 1], [], []>} : vector<64x32xbf16>, vector<32x64xbf16>, vector<64x64xf32> -> vector<64x64xf32>
    %c16_12 = arith.constant 16 : index
    %c0_13 = arith.constant 0 : index
    %20 = vector.load %arg4[%c16_12, %c0_13] : memref<56x128xf32, #tpu.memory_space<vmem>>, vector<1x64xf32>
    %21 = vector.broadcast %20 : vector<1x64xf32> to vector<64x64xf32>
    %22 = arith.addf %19, %21 : vector<64x64xf32>
    %c0_14 = arith.constant 0 : index
    %c0_15 = arith.constant 0 : index
    %c0_16 = arith.constant 0 : index
    %23 = vector.load %arg2[%c0_14, %c0_15, %c0_16] : memref<2x64x64xbf16, #tpu.memory_space<vmem>>, vector<1x64x64xbf16>
    %24 = vector.shape_cast %23 : vector<1x64x64xbf16> to vector<64x64xbf16>
    %c80 = arith.constant 80 : index
    %c0_17 = arith.constant 0 : index
    %25 = vector.load %arg3[%c80, %c0_17] : memref<336x128xbf16, #tpu.memory_space<vmem>>, vector<64x32xbf16>
    %26 = arith.truncf %22 : vector<64x64xf32> to vector<64x64xbf16>
    %cst_18 = arith.constant dense<0.000000e+00> : vector<64x32xf32>
    %27 = tpu.matmul %26, %25, %cst_18 {dimension_numbers = #tpu.dot_dimension_numbers<[1], [0], [0], [1], [0, 0, 1, 1], [], []>} : vector<64x64xbf16>, vector<64x32xbf16>, vector<64x32xf32> -> vector<64x32xf32>
    %28 = arith.truncf %27 : vector<64x32xf32> to vector<64x32xbf16>
    %cst_19 = arith.constant dense<0.000000e+00> : vector<64x32xf32>
    %29 = tpu.matmul %24, %28, %cst_19 {dimension_numbers = #tpu.dot_dimension_numbers<[1], [0], [0], [1], [0, 0, 1, 1], [], []>} : vector<64x64xbf16>, vector<64x32xbf16>, vector<64x32xf32> -> vector<64x32xf32>
    %c144 = arith.constant 144 : index
    %c0_20 = arith.constant 0 : index
    %30 = vector.load %arg3[%c144, %c0_20] : memref<336x128xbf16, #tpu.memory_space<vmem>>, vector<64x32xbf16>
    %31 = arith.truncf %22 : vector<64x64xf32> to vector<64x64xbf16>
    %cst_21 = arith.constant dense<0.000000e+00> : vector<64x32xf32>
    %32 = tpu.matmul %31, %30, %cst_21 {dimension_numbers = #tpu.dot_dimension_numbers<[1], [0], [0], [1], [0, 0, 1, 1], [], []>} : vector<64x64xbf16>, vector<64x32xbf16>, vector<64x32xf32> -> vector<64x32xf32>
    %33 = arith.addf %29, %32 : vector<64x32xf32>
    %c24 = arith.constant 24 : index
    %c0_22 = arith.constant 0 : index
    %34 = vector.load %arg4[%c24, %c0_22] : memref<56x128xf32, #tpu.memory_space<vmem>>, vector<1x32xf32>
    %35 = vector.broadcast %34 : vector<1x32xf32> to vector<64x32xf32>
    %36 = arith.addf %33, %35 : vector<64x32xf32>
    %cst_23 = arith.constant 0.000000e+00 : f32
    %37 = vector.broadcast %cst_23 : f32 to vector<64x32xf32>
    %38 = arith.maximumf %36, %37 : vector<64x32xf32>
    %c1 = arith.constant 1 : index
    %c0_24 = arith.constant 0 : index
    %c0_25 = arith.constant 0 : index
    %39 = vector.load %arg2[%c1, %c0_24, %c0_25] : memref<2x64x64xbf16, #tpu.memory_space<vmem>>, vector<1x64x64xbf16>
    %40 = vector.shape_cast %39 : vector<1x64x64xbf16> to vector<64x64xbf16>
    %c208 = arith.constant 208 : index
    %c0_26 = arith.constant 0 : index
    %41 = vector.load %arg3[%c208, %c0_26] : memref<336x128xbf16, #tpu.memory_space<vmem>>, vector<32x32xbf16>
    %42 = arith.truncf %38 : vector<64x32xf32> to vector<64x32xbf16>
    %cst_27 = arith.constant dense<0.000000e+00> : vector<64x32xf32>
    %43 = tpu.matmul %42, %41, %cst_27 {dimension_numbers = #tpu.dot_dimension_numbers<[1], [0], [0], [1], [0, 0, 1, 1], [], []>} : vector<64x32xbf16>, vector<32x32xbf16>, vector<64x32xf32> -> vector<64x32xf32>
    %44 = arith.truncf %43 : vector<64x32xf32> to vector<64x32xbf16>
    %cst_28 = arith.constant dense<0.000000e+00> : vector<64x32xf32>
    %45 = tpu.matmul %40, %44, %cst_28 {dimension_numbers = #tpu.dot_dimension_numbers<[1], [0], [0], [1], [0, 0, 1, 1], [], []>} : vector<64x64xbf16>, vector<64x32xbf16>, vector<64x32xf32> -> vector<64x32xf32>
    %c240 = arith.constant 240 : index
    %c0_29 = arith.constant 0 : index
    %46 = vector.load %arg3[%c240, %c0_29] : memref<336x128xbf16, #tpu.memory_space<vmem>>, vector<32x32xbf16>
    %47 = arith.truncf %38 : vector<64x32xf32> to vector<64x32xbf16>
    %cst_30 = arith.constant dense<0.000000e+00> : vector<64x32xf32>
    %48 = tpu.matmul %47, %46, %cst_30 {dimension_numbers = #tpu.dot_dimension_numbers<[1], [0], [0], [1], [0, 0, 1, 1], [], []>} : vector<64x32xbf16>, vector<32x32xbf16>, vector<64x32xf32> -> vector<64x32xf32>
    %49 = arith.addf %45, %48 : vector<64x32xf32>
    %c32 = arith.constant 32 : index
    %c0_31 = arith.constant 0 : index
    %50 = vector.load %arg4[%c32, %c0_31] : memref<56x128xf32, #tpu.memory_space<vmem>>, vector<1x32xf32>
    %51 = vector.broadcast %50 : vector<1x32xf32> to vector<64x32xf32>
    %52 = arith.addf %49, %51 : vector<64x32xf32>
    %cst_32 = arith.constant 0.000000e+00 : f32
    %53 = vector.broadcast %cst_32 : f32 to vector<64x32xf32>
    %54 = arith.maximumf %52, %53 : vector<64x32xf32>
    %c272 = arith.constant 272 : index
    %c0_33 = arith.constant 0 : index
    %55 = vector.load %arg3[%c272, %c0_33] : memref<336x128xbf16, #tpu.memory_space<vmem>>, vector<32x32xbf16>
    %56 = arith.truncf %54 : vector<64x32xf32> to vector<64x32xbf16>
    %cst_34 = arith.constant dense<0.000000e+00> : vector<64x32xf32>
    %57 = tpu.matmul %56, %55, %cst_34 {dimension_numbers = #tpu.dot_dimension_numbers<[1], [0], [0], [1], [0, 0, 1, 1], [], []>} : vector<64x32xbf16>, vector<32x32xbf16>, vector<64x32xf32> -> vector<64x32xf32>
    %c40 = arith.constant 40 : index
    %c0_35 = arith.constant 0 : index
    %58 = vector.load %arg4[%c40, %c0_35] : memref<56x128xf32, #tpu.memory_space<vmem>>, vector<1x32xf32>
    %59 = vector.broadcast %58 : vector<1x32xf32> to vector<64x32xf32>
    %60 = arith.addf %57, %59 : vector<64x32xf32>
    %cst_36 = arith.constant 0.000000e+00 : f32
    %61 = vector.broadcast %cst_36 : f32 to vector<64x32xf32>
    %62 = arith.maximumf %60, %61 : vector<64x32xf32>
    %c304 = arith.constant 304 : index
    %c0_37 = arith.constant 0 : index
    %63 = vector.load %arg3[%c304, %c0_37] : memref<336x128xbf16, #tpu.memory_space<vmem>>, vector<32x8xbf16>
    %64 = arith.truncf %62 : vector<64x32xf32> to vector<64x32xbf16>
    %cst_38 = arith.constant dense<0.000000e+00> : vector<64x8xf32>
    %65 = tpu.matmul %64, %63, %cst_38 {dimension_numbers = #tpu.dot_dimension_numbers<[1], [0], [0], [1], [0, 0, 1, 1], [], []>} : vector<64x32xbf16>, vector<32x8xbf16>, vector<64x8xf32> -> vector<64x8xf32>
    %c48_39 = arith.constant 48 : index
    %c0_40 = arith.constant 0 : index
    %66 = vector.load %arg4[%c48_39, %c0_40] : memref<56x128xf32, #tpu.memory_space<vmem>>, vector<1x8xf32>
    %67 = vector.broadcast %66 : vector<1x8xf32> to vector<64x8xf32>
    %68 = arith.addf %65, %67 : vector<64x8xf32>
    %cst_41 = arith.constant dense<0xFF800000> : vector<64xf32>
    %69 = vector.multi_reduction <maximumf>, %68, %cst_41 [1] : vector<64x8xf32> to vector<64xf32>
    %70 = vector.shape_cast %69 : vector<64xf32> to vector<64x1xf32>
    %71 = vector.broadcast %70 : vector<64x1xf32> to vector<64x8xf32>
    %72 = arith.subf %68, %71 : vector<64x8xf32>
    %73 = math.exp %72 : vector<64x8xf32>
    %74 = vector.broadcast %70 : vector<64x1xf32> to vector<64x8xf32>
    %75 = arith.subf %68, %74 : vector<64x8xf32>
    %cst_42 = arith.constant dense<0.000000e+00> : vector<64xf32>
    %76 = vector.multi_reduction <add>, %73, %cst_42 [1] : vector<64x8xf32> to vector<64xf32>
    %77 = vector.shape_cast %76 : vector<64xf32> to vector<64x1xf32>
    %78 = math.log %77 : vector<64x1xf32>
    %79 = vector.broadcast %78 : vector<64x1xf32> to vector<64x8xf32>
    %80 = arith.subf %75, %79 : vector<64x8xf32>
    %c0_43 = arith.constant 0 : index
    %c0_44 = arith.constant 0 : index
    %81 = vector.load %arg5[%c0_43, %c0_44] : memref<64x8xf32, #tpu.memory_space<vmem>>, vector<64x8xf32>
    tpu.vector_store %arg5[%c0_43, %c0_44], %80 {strides = array<i32>} : memref<64x8xf32, #tpu.memory_space<vmem>>, vector<64x8xf32>,
    return
  }
  func.func @transform_0(%arg0: i32) -> (i32, i32) {
    %c0_i32 = arith.constant 0 : i32
    %c0_i32_0 = arith.constant 0 : i32
    %c0_i32_1 = arith.constant 0 : i32
    return %c0_i32, %c0_i32_0 : i32, i32
  }
  func.func @transform_1(%arg0: i32) -> (i32, i32, i32) {
    %c0_i32 = arith.constant 0 : i32
    %c0_i32_0 = arith.constant 0 : i32
    %c0_i32_1 = arith.constant 0 : i32
    %c0_i32_2 = arith.constant 0 : i32
    return %c0_i32, %c0_i32_0, %c0_i32_1 : i32, i32, i32
  }
  func.func @transform_2(%arg0: i32) -> (i32, i32) {
    %c0_i32 = arith.constant 0 : i32
    %c0_i32_0 = arith.constant 0 : i32
    %c0_i32_1 = arith.constant 0 : i32
    return %c0_i32, %c0_i32_0 : i32, i32
  }
  func.func @transform_3(%arg0: i32) -> (i32, i32) {
    %c0_i32 = arith.constant 0 : i32
    %c0_i32_0 = arith.constant 0 : i32
    %c0_i32_1 = arith.constant 0 : i32
    return %c0_i32, %c0_i32_0 : i32, i32
  }
  func.func @transform_4(%arg0: i32) -> (i32, i32) {
    %c0_i32 = arith.constant 0 : i32
    %c0_i32_0 = arith.constant 0 : i32
    %c0_i32_1 = arith.constant 0 : i32
    return %c0_i32, %c0_i32_0 : i32, i32
  }
}

</mosaic_0001>

<llo_original>
// kernel: tpu_custom_call.1
$region0: #{tpu_custom_call.1}
  #allocation0 [shape = 'u32[]', space=smem, size = 0x4, offset = 0x4, fixed_abs, tag = 'smem constant byte address 0x4 - core index']
  #allocation1 [shape = 'u32[144,128]{1,0:T(1,128)}', space=vmem, size = 0x12000, scoped, tag = 'internal scratch']
  %s0 = inlined_call_operand.vmem [shape: f32[64,16], index: 0, kind: input, shape index: {}]
  %s1 = inlined_call_operand.vmem [shape: bf16[2,64,64], index: 1, kind: input, shape index: {}]
  %s2 = inlined_call_operand.hbm [shape: bf16[336,128], index: 2, kind: input, shape index: {}]
  %s3 = inlined_call_operand.hbm [shape: f32[56,128], index: 3, kind: input, shape index: {}]
  %s4 = inlined_call_operand.vmem [shape: f32[64,8], index: 4, kind: output, shape index: {}]
  %s5 = sld [smem:[#allocation0]]
  $region34: #{tpu_custom_call.1} parent=0
    _
  %s7 = ssub.s32 1, %s5
  %s8 = scalar_select 0, %s7, %s5
  $region1: #{tpu_custom_call.1} parent=0
    #allocation2 [shape = 'u8[86016]{0}', space=vmem, size = 0x15000, scoped, tag = 'input window, operand 2, single buffered']
    #allocation3 [shape = 's32[1]{0}', space=sflag, size = 0x4, scoped, tag = 'scoped memory for tpu_custom_call.1']
    #allocation4 [shape = 'u8[28672]{0}', space=vmem, size = 0x7000, scoped, tag = 'input window, operand 3, single buffered']
    #allocation5 [shape = 's32[1]{0}', space=sflag, size = 0x4, scoped, tag = 'scoped memory for tpu_custom_call.1']
    %9 = vsyncpa [#allocation3], 0
    %10 = vsyncpa [#allocation5], 0
    // Predicated region
    $region2: #{tpu_custom_call.1} parent=1 // pred_check
      _
    $region3: #{tpu_custom_call.1} parent=1 // pred_check_branch
      %12 = sbr.rel (0) target = $region5
    $region4: #{tpu_custom_call.1} parent=1 // pred_region
      _
    $region5: #{tpu_custom_call.1} parent=1 // pred_fallthru
      _
    // Predicated region
    $region6: #{tpu_custom_call.1} parent=1 // pred_check
      _
    $region7: #{tpu_custom_call.1} parent=1 // pred_check_branch
      %14 = sbr.rel (0) target = $region9
    $region8: #{tpu_custom_call.1} parent=1 // pred_region
      _
    $region9: #{tpu_custom_call.1} parent=1 // pred_fallthru
      _
    // Predicated region
    $region10: #{tpu_custom_call.1} parent=1 // pred_check
      _
    $region11: #{tpu_custom_call.1} parent=1 // pred_check_branch
      %16 = sbr.rel (0) target = $region13
    $region12: #{tpu_custom_call.1} parent=1 // pred_region
      %s18 = ssub.s32 2688, 2688
      %19 = vsyncadd [#allocation3], %s18
      %s20 = sshll.u32 [#allocation2], 4
      %s21 = int_to_ptr.vmem [resolvable:$true] %s20
      %26 = dma.hbm_to_vmem [thread:$0]  %s2, 2688, %s21, [#allocation3], 64, 64, 4
    $region13: #{tpu_custom_call.1} parent=1 // pred_fallthru
      _
    // Predicated region
    $region14: #{tpu_custom_call.1} parent=1 // pred_check
      _
    $region15: #{tpu_custom_call.1} parent=1 // pred_check_branch
      %28 = sbr.rel (0) target = $region17
    $region16: #{tpu_custom_call.1} parent=1 // pred_region
      %s30 = ssub.s32 896, 896
      %31 = vsyncadd [#allocation5], %s30
      %s32 = sshll.u32 [#allocation4], 4
      %s33 = int_to_ptr.vmem [resolvable:$true] %s32
      %38 = dma.hbm_to_vmem [thread:$0]  %s3, 896, %s33, [#allocation5], 128, 128, 8
    $region17: #{tpu_custom_call.1} parent=1 // pred_fallthru
      _
    // Predicated region
    $region18: #{tpu_custom_call.1} parent=1 // pred_check
      _
    $region19: #{tpu_custom_call.1} parent=1 // pred_check_branch
      %40 = sbr.rel (0) target = $region21
    $region20: #{tpu_custom_call.1} parent=1 // pred_region
      %41 = dma.done [#allocation3], 2688
    $region21: #{tpu_custom_call.1} parent=1 // pred_fallthru
      _
    // Predicated region
    $region22: #{tpu_custom_call.1} parent=1 // pred_check
      _
    $region23: #{tpu_custom_call.1} parent=1 // pred_check_branch
      %43 = sbr.rel (0) target = $region25
    $region24: #{tpu_custom_call.1} parent=1 // pred_region
      %44 = dma.done [#allocation5], 896
    $region25: #{tpu_custom_call.1} parent=1 // pred_fallthru
      _
    %v46 = vld [vmem:[%s0] sm:$0xff]
    %v47 = vld [vmem:[%s0 + $0x8] sm:$0xff]
    %v48 = vld [vmem:[%s0 + $0x10] sm:$0xff]
    %v49 = vld [vmem:[%s0 + $0x18] sm:$0xff]
    %v50 = vld [vmem:[%s0 + $0x20] sm:$0xff]
    %v51 = vld [vmem:[%s0 + $0x28] sm:$0xff]
    %v52 = vld [vmem:[%s0 + $0x30] sm:$0xff]
    %v53 = vld [vmem:[%s0 + $0x38] sm:$0xff]
    %v54 = vld [vmem:[#allocation2] sm:$0xf]
    %v55 = vld [vmem:[#allocation2 + $0x4] sm:$0xf]
    %v56 = vpack.c.bf16 %v47, %v46
    %v57 = vpack.c.bf16 %v49, %v48
    %v58 = vpack.c.bf16 %v51, %v50
    %v59 = vpack.c.bf16 %v53, %v52
    %v60 = vld [vmem:[#allocation4] sm:$0x1]
    %v61 = vlaneseq
    %v62 = vshrl.u32 %v61, 7
    %v63 = vsub.s32 0, %v62
    %v64 = vrot.slane %v60, %v63
    %v67 = vunpack.c.l.b16 %v54
    %v68 = vunpack.c.l.b16 %v55
    %v69 = vpack.c.b16 %v68, %v67
    %vm71 = vcmask 130048
    %v73 = vsel %vm71, %v56, 0
    %v76 = vsel %vm71, %v57, 0
    %v79 = vsel %vm71, %v58, 0
    %v82 = vsel %vm71, %v59, 0
    %84 = vmatprep.subr.bf16.mxu0 0
    %85 = vmatpush1.bf16.msra.mxu0 %v69
    %86 = vmatprep.subr.bf16.mxu0 0
    %87 = vmatpush1.bf16.msra.mxu0 0
    %88 = vmatprep.subr.bf16.mxu0 0
    %89 = vmatpush1.bf16.msra.mxu0 0
    %90 = vmatprep.subr.bf16.mxu0 0
    %91 = vmatpush1.bf16.msra.mxu0 0
    %92 = vmatprep.subr.bf16.mxu0 0
    %93 = vmatpush1.bf16.msra.mxu0 0
    %94 = vmatprep.subr.bf16.mxu0 0
    %95 = vmatpush1.bf16.msra.mxu0 0
    %96 = vmatprep.subr.bf16.mxu0 0
    %97 = vmatpush1.bf16.msra.mxu0 0
    %98 = vmatprep.subr.bf16.mxu0 0
    %99 = vmatpush1.bf16.msra.mxu0 0
    %100 = vmatprep.subr.bf16.mxu0 0
    %101 = vmatpush1.bf16.msra.mxu0 0
    %102 = vmatprep.subr.bf16.mxu0 0
    %103 = vmatpush1.bf16.msra.mxu0 0
    %104 = vmatprep.subr.bf16.mxu0 0
    %105 = vmatpush1.bf16.msra.mxu0 0
    %106 = vmatprep.subr.bf16.mxu0 0
    %107 = vmatpush1.bf16.msra.mxu0 0
    %108 = vmatprep.subr.bf16.mxu0 0
    %109 = vmatpush1.bf16.msra.mxu0 0
    %110 = vmatprep.subr.bf16.mxu0 0
    %111 = vmatpush1.bf16.msra.mxu0 0
    %112 = vmatprep.subr.bf16.mxu0 0
    %113 = vmatpush1.bf16.msra.mxu0 0
    %114 = vmatprep.subr.bf16.mxu0 0
    %115 = vmatpush1.bf16.msra.mxu0 0
    %116 = vmatprep.mubr.bf16.mxu0 0
    %117 = vmatmul.mubr.bf16.gmra.mrb[0].mxu0 %v73
    %v118 = vpop.f32.mrb[0].mxu0
    %v119 = vadd.f32 %v64, %v118
    %v120 = vpop.f32.mrb[0].mxu0
    %v121 = vpop.f32.mrb[0].mxu0
    %v122 = vadd.f32 %v64, %v121
    %v123 = vpop.f32.mrb[0].mxu0
    %124 = vmatprep.mubr.bf16.mxu0 0
    %125 = vmatmul.mubr.bf16.gmra.mrb[0].mxu0 %v76
    %v126 = vpop.f32.mrb[0].mxu0
    %v127 = vadd.f32 %v64, %v126
    %v128 = vpop.f32.mrb[0].mxu0
    %v129 = vpop.f32.mrb[0].mxu0
    %v130 = vadd.f32 %v64, %v129
    %v131 = vpop.f32.mrb[0].mxu0
    %132 = vmatprep.mubr.bf16.mxu0 0
    %133 = vmatmul.mubr.bf16.gmra.mrb[0].mxu0 %v79
    %v134 = vpop.f32.mrb[0].mxu0
    %v135 = vadd.f32 %v64, %v134
    %v136 = vpop.f32.mrb[0].mxu0
    %v137 = vpop.f32.mrb[0].mxu0
    %v138 = vadd.f32 %v64, %v137
    %v139 = vpop.f32.mrb[0].mxu0
    %140 = vmatprep.mubr.bf16.mxu0 0
    %141 = vmatmul.mubr.bf16.gmra.mrb[0].mxu0 %v82
    %v142 = vpop.f32.mrb[0].mxu0
    %v143 = vadd.f32 %v64, %v142
    %v144 = vpop.f32.mrb[0].mxu0
    %v145 = vpop.f32.mrb[0].mxu0
    %v146 = vadd.f32 %v64, %v145
    %v147 = vpop.f32.mrb[0].mxu0
    %148 = vdwg.mxu0
    %v149 = vmax.f32 %v119, 0.0
    %v150 = vmax.f32 %v122, 0.0
    %v151 = vmax.f32 %v127, 0.0
    %v152 = vmax.f32 %v130, 0.0
    %v153 = vmax.f32 %v135, 0.0
    %v154 = vmax.f32 %v138, 0.0
    %v155 = vmax.f32 %v143, 0.0
    %v156 = vmax.f32 %v146, 0.0
    %v157 = vld [vmem:[#allocation2 + $0x8] sm:$0xf]
    %v158 = vld [vmem:[#allocation2 + $0xc] sm:$0xf]
    %v159 = vld [vmem:[#allocation2 + $0x10] sm:$0xf]
    %v160 = vld [vmem:[#allocation2 + $0x14] sm:$0xf]
    %v161 = vpack.c.bf16 %v150, %v149
    %v162 = vpack.c.bf16 %v152, %v151
    %v163 = vpack.c.bf16 %v154, %v153
    %v164 = vpack.c.bf16 %v156, %v155
    %v165 = vld [vmem:[#allocation4 + $0x8] sm:$0x1]
    %v166 = vlaneseq
    %v167 = vshrl.u32 %v166, 7
    %v168 = vsub.s32 0, %v167
    %v169 = vrot.slane %v165, %v168
    %v174 = vunpack.c.l.b16 %v157
    %v175 = vunpack.c.l.b16 %v158
    %v176 = vunpack.c.l.b16 %v159
    %v177 = vunpack.c.l.b16 %v160
    %v178 = vpack.c.b16 %v175, %v174
    %v179 = vpack.c.b16 %v177, %v176
    %vm182 = vcmask 261120
    %v184 = vsel %vm182, %v161, 0
    %v187 = vsel %vm182, %v162, 0
    %v190 = vsel %vm182, %v163, 0
    %v193 = vsel %vm182, %v164, 0
    %195 = vmatprep.subr.bf16.mxu0 0
    %196 = vmatpush1.bf16.msra.mxu0 %v178
    %197 = vmatprep.subr.bf16.mxu0 0
    %198 = vmatpush1.bf16.msra.mxu0 %v179
    %199 = vmatprep.subr.bf16.mxu0 0
    %200 = vmatpush1.bf16.msra.mxu0 0
    %201 = vmatprep.subr.bf16.mxu0 0
    %202 = vmatpush1.bf16.msra.mxu0 0
    %203 = vmatprep.subr.bf16.mxu0 0
    %204 = vmatpush1.bf16.msra.mxu0 0
    %205 = vmatprep.subr.bf16.mxu0 0
    %206 = vmatpush1.bf16.msra.mxu0 0
    %207 = vmatprep.subr.bf16.mxu0 0
    %208 = vmatpush1.bf16.msra.mxu0 0
    %209 = vmatprep.subr.bf16.mxu0 0
    %210 = vmatpush1.bf16.msra.mxu0 0
    %211 = vmatprep.subr.bf16.mxu0 0
    %212 = vmatpush1.bf16.msra.mxu0 0
    %213 = vmatprep.subr.bf16.mxu0 0
    %214 = vmatpush1.bf16.msra.mxu0 0
    %215 = vmatprep.subr.bf16.mxu0 0
    %216 = vmatpush1.bf16.msra.mxu0 0
    %217 = vmatprep.subr.bf16.mxu0 0
    %218 = vmatpush1.bf16.msra.mxu0 0
    %219 = vmatprep.subr.bf16.mxu0 0
    %220 = vmatpush1.bf16.msra.mxu0 0
    %221 = vmatprep.subr.bf16.mxu0 0
    %222 = vmatpush1.bf16.msra.mxu0 0
    %223 = vmatprep.subr.bf16.mxu0 0
    %224 = vmatpush1.bf16.msra.mxu0 0
    %225 = vmatprep.subr.bf16.mxu0 0
    %226 = vmatpush1.bf16.msra.mxu0 0
    %227 = vmatprep.mubr.bf16.mxu0 0
    %228 = vmatmul.mubr.bf16.gmra.mrb[0].mxu0 %v184
    %v229 = vpop.f32.mrb[0].mxu0
    %v230 = vadd.f32 %v169, %v229
    %v231 = vpop.f32.mrb[0].mxu0
    %v232 = vpop.f32.mrb[0].mxu0
    %v233 = vadd.f32 %v169, %v232
    %v234 = vpop.f32.mrb[0].mxu0
    %235 = vmatprep.mubr.bf16.mxu0 0
    %236 = vmatmul.mubr.bf16.gmra.mrb[0].mxu0 %v187
    %v237 = vpop.f32.mrb[0].mxu0
    %v238 = vadd.f32 %v169, %v237
    %v239 = vpop.f32.mrb[0].mxu0
    %v240 = vpop.f32.mrb[0].mxu0
    %v241 = vadd.f32 %v169, %v240
    %v242 = vpop.f32.mrb[0].mxu0
    %243 = vmatprep.mubr.bf16.mxu0 0
    %244 = vmatmul.mubr.bf16.gmra.mrb[0].mxu0 %v190
    %v245 = vpop.f32.mrb[0].mxu0
    %v246 = vadd.f32 %v169, %v245
    %v247 = vpop.f32.mrb[0].mxu0
    %v248 = vpop.f32.mrb[0].mxu0
    %v249 = vadd.f32 %v169, %v248
    %v250 = vpop.f32.mrb[0].mxu0
    %251 = vmatprep.mubr.bf16.mxu0 0
    %252 = vmatmul.mubr.bf16.gmra.mrb[0].mxu0 %v193
    %v253 = vpop.f32.mrb[0].mxu0
    %v254 = vadd.f32 %v169, %v253
    %v255 = vpop.f32.mrb[0].mxu0
    %v256 = vpop.f32.mrb[0].mxu0
    %v257 = vadd.f32 %v169, %v256
    %v258 = vpop.f32.mrb[0].mxu0
    %259 = vdwg.mxu0
    %v260 = vmax.f32 %v230, 0.0
    %v261 = vmax.f32 %v233, 0.0
    %v262 = vmax.f32 %v238, 0.0
    %v263 = vmax.f32 %v241, 0.0
    %v264 = vmax.f32 %v246, 0.0
    %v265 = vmax.f32 %v249, 0.0
    %v266 = vmax.f32 %v254, 0.0
    %v267 = vmax.f32 %v257, 0.0
    %v268 = vld [vmem:[#allocation2 + $0x18] sm:$0xf]
    %v269 = vld [vmem:[#allocation2 + $0x1c] sm:$0xf]
    %v270 = vld [vmem:[#allocation2 + $0x20] sm:$0xf]
    %v271 = vld [vmem:[#allocation2 + $0x24] sm:$0xf]
    %v272 = vpack.c.bf16 %v261, %v260
    %v273 = vpack.c.bf16 %v263, %v262
    %v274 = vpack.c.bf16 %v265, %v264
    %v275 = vpack.c.bf16 %v267, %v266
    %v276 = vld [vmem:[#allocation4 + $0x10] sm:$0x1]
    %v277 = vlaneseq
    %v278 = vshrl.u32 %v277, 7
    %v279 = vsub.s32 0, %v278
    %v280 = vrot.slane %v276, %v279
    %v285 = vunpack.c.l.b16 %v268
    %v286 = vunpack.c.l.b16 %v269
    %v287 = vunpack.c.l.b16 %v270
    %v288 = vunpack.c.l.b16 %v271
    %v289 = vpack.c.b16 %v286, %v285
    %v290 = vpack.c.b16 %v288, %v287
    %v294 = vsel %vm182, %v272, 0
    %v297 = vsel %vm182, %v273, 0
    %v300 = vsel %vm182, %v274, 0
    %v303 = vsel %vm182, %v275, 0
    %305 = vmatprep.subr.bf16.mxu0 0
    %306 = vmatpush1.bf16.msra.mxu0 %v289
    %307 = vmatprep.subr.bf16.mxu0 0
    %308 = vmatpush1.bf16.msra.mxu0 %v290
    %309 = vmatprep.subr.bf16.mxu0 0
    %310 = vmatpush1.bf16.msra.mxu0 0
    %311 = vmatprep.subr.bf16.mxu0 0
    %312 = vmatpush1.bf16.msra.mxu0 0
    %313 = vmatprep.subr.bf16.mxu0 0
    %314 = vmatpush1.bf16.msra.mxu0 0
    %315 = vmatprep.subr.bf16.mxu0 0
    %316 = vmatpush1.bf16.msra.mxu0 0
    %317 = vmatprep.subr.bf16.mxu0 0
    %318 = vmatpush1.bf16.msra.mxu0 0
    %319 = vmatprep.subr.bf16.mxu0 0
    %320 = vmatpush1.bf16.msra.mxu0 0
    %321 = vmatprep.subr.bf16.mxu0 0
    %322 = vmatpush1.bf16.msra.mxu0 0
    %323 = vmatprep.subr.bf16.mxu0 0
    %324 = vmatpush1.bf16.msra.mxu0 0
    %325 = vmatprep.subr.bf16.mxu0 0
    %326 = vmatpush1.bf16.msra.mxu0 0
    %327 = vmatprep.subr.bf16.mxu0 0
    %328 = vmatpush1.bf16.msra.mxu0 0
    %329 = vmatprep.subr.bf16.mxu0 0
    %330 = vmatpush1.bf16.msra.mxu0 0
    %331 = vmatprep.subr.bf16.mxu0 0
    %332 = vmatpush1.bf16.msra.mxu0 0
    %333 = vmatprep.subr.bf16.mxu0 0
    %334 = vmatpush1.bf16.msra.mxu0 0
    %335 = vmatprep.subr.bf16.mxu0 0
    %336 = vmatpush1.bf16.msra.mxu0 0
    %337 = vmatprep.mubr.bf16.mxu0 0
    %338 = vmatmul.mubr.bf16.gmra.mrb[0].mxu0 %v294
    %v339 = vpop.f32.mrb[0].mxu0
    %v340 = vadd.f32 %v280, %v339
    %v341 = vpop.f32.mrb[0].mxu0
    %v342 = vpop.f32.mrb[0].mxu0
    %v343 = vadd.f32 %v280, %v342
    %v344 = vpop.f32.mrb[0].mxu0
    %345 = vmatprep.mubr.bf16.mxu0 0
    %346 = vmatmul.mubr.bf16.gmra.mrb[0].mxu0 %v297
    %v347 = vpop.f32.mrb[0].mxu0
    %v348 = vadd.f32 %v280, %v347
    %v349 = vpop.f32.mrb[0].mxu0
    %v350 = vpop.f32.mrb[0].mxu0
    %v351 = vadd.f32 %v280, %v350
    %v352 = vpop.f32.mrb[0].mxu0
    %353 = vmatprep.mubr.bf16.mxu0 0
    %354 = vmatmul.mubr.bf16.gmra.mrb[0].mxu0 %v300
    %v355 = vpop.f32.mrb[0].mxu0
    %v356 = vadd.f32 %v280, %v355
    %v357 = vpop.f32.mrb[0].mxu0
    %v358 = vpop.f32.mrb[0].mxu0
    %v359 = vadd.f32 %v280, %v358
    %v360 = vpop.f32.mrb[0].mxu0
    %361 = vmatprep.mubr.bf16.mxu0 0
    %362 = vmatmul.mubr.bf16.gmra.mrb[0].mxu0 %v303
    %v363 = vpop.f32.mrb[0].mxu0
    %v364 = vadd.f32 %v280, %v363
    %v365 = vpop.f32.mrb[0].mxu0
    %v366 = vpop.f32.mrb[0].mxu0
    %v367 = vadd.f32 %v280, %v366
    %v368 = vpop.f32.mrb[0].mxu0
    %369 = vdwg.mxu0
    %v370 = vld [vmem:[%s1] sm:$0xf]
    %v371 = vld [vmem:[%s1 + $0x4] sm:$0xf]
    %v372 = vld [vmem:[%s1 + $0x8] sm:$0xf]
    %v373 = vld [vmem:[%s1 + $0xc] sm:$0xf]
    %v374 = vld [vmem:[%s1 + $0x10] sm:$0xf]
    %v375 = vld [vmem:[%s1 + $0x14] sm:$0xf]
    %v376 = vld [vmem:[%s1 + $0x18] sm:$0xf]
    %v377 = vld [vmem:[%s1 + $0x1c] sm:$0xf]
    %v378 = vld [vmem:[#allocation2 + $0x28] sm:$0xf]
    %v379 = vld [vmem:[#allocation2 + $0x2c] sm:$0xf]
    %v380 = vld [vmem:[#allocation2 + $0x30] sm:$0xf]
    %v381 = vld [vmem:[#allocation2 + $0x34] sm:$0xf]
    %v382 = vld [vmem:[#allocation2 + $0x38] sm:$0xf]
    %v383 = vld [vmem:[#allocation2 + $0x3c] sm:$0xf]
    %v384 = vld [vmem:[#allocation2 + $0x40] sm:$0xf]
    %v385 = vld [vmem:[#allocation2 + $0x44] sm:$0xf]
    %v386 = vpack.c.bf16 %v343, %v340
    %v387 = vpack.c.bf16 %v351, %v348
    %v388 = vpack.c.bf16 %v359, %v356
    %v389 = vpack.c.bf16 %v367, %v364
    %v398 = vunpack.c.l.b16 %v378
    %v399 = vunpack.c.l.b16 %v379
    %v400 = vunpack.c.l.b16 %v380
    %v401 = vunpack.c.l.b16 %v381
    %v402 = vunpack.c.l.b16 %v382
    %v403 = vunpack.c.l.b16 %v383
    %v404 = vunpack.c.l.b16 %v384
    %v405 = vunpack.c.l.b16 %v385
    %v406 = vpack.c.b16 %v399, %v398
    %v407 = vpack.c.b16 %v401, %v400
    %v408 = vpack.c.b16 %v403, %v402
    %v409 = vpack.c.b16 %v405, %v404
    %vm414 = vcmask 523264
    %v416 = vsel %vm414, %v386, 0
    %v419 = vsel %vm414, %v387, 0
    %v422 = vsel %vm414, %v388, 0
    %v425 = vsel %vm414, %v389, 0
    %427 = vmatprep.subr.bf16.mxu0 0
    %428 = vmatpush1.bf16.msra.mxu0 %v406
    %429 = vmatprep.subr.bf16.mxu0 0
    %430 = vmatpush1.bf16.msra.mxu0 %v407
    %431 = vmatprep.subr.bf16.mxu0 0
    %432 = vmatpush1.bf16.msra.mxu0 %v408
    %433 = vmatprep.subr.bf16.mxu0 0
    %434 = vmatpush1.bf16.msra.mxu0 %v409
    %435 = vmatprep.subr.bf16.mxu0 0
    %436 = vmatpush1.bf16.msra.mxu0 0
    %437 = vmatprep.subr.bf16.mxu0 0
    %438 = vmatpush1.bf16.msra.mxu0 0
    %439 = vmatprep.subr.bf16.mxu0 0
    %440 = vmatpush1.bf16.msra.mxu0 0
    %441 = vmatprep.subr.bf16.mxu0 0
    %442 = vmatpush1.bf16.msra.mxu0 0
    %443 = vmatprep.subr.bf16.mxu0 0
    %444 = vmatpush1.bf16.msra.mxu0 0
    %445 = vmatprep.subr.bf16.mxu0 0
    %446 = vmatpush1.bf16.msra.mxu0 0
    %447 = vmatprep.subr.bf16.mxu0 0
    %448 = vmatpush1.bf16.msra.mxu0 0
    %449 = vmatprep.subr.bf16.mxu0 0
    %450 = vmatpush1.bf16.msra.mxu0 0
    %451 = vmatprep.subr.bf16.mxu0 0
    %452 = vmatpush1.bf16.msra.mxu0 0
    %453 = vmatprep.subr.bf16.mxu0 0
    %454 = vmatpush1.bf16.msra.mxu0 0
    %455 = vmatprep.subr.bf16.mxu0 0
    %456 = vmatpush1.bf16.msra.mxu0 0
    %457 = vmatprep.subr.bf16.mxu0 0
    %458 = vmatpush1.bf16.msra.mxu0 0
    %459 = vmatprep.mubr.bf16.mxu0 0
    %460 = vmatmul.mubr.bf16.gmra.mrb[0].mxu0 %v416
    %v461 = vpop.f32.mrb[0].mxu0
    %v462 = vadd.f32 0.0, %v461
    %v463 = vpop.f32.mrb[0].mxu0
    %v464 = vpop.f32.mrb[0].mxu0
    %v465 = vadd.f32 0.0, %v464
    %v466 = vpop.f32.mrb[0].mxu0
    %467 = vmatprep.mubr.bf16.mxu0 0
    %468 = vmatmul.mubr.bf16.gmra.mrb[0].mxu0 %v419
    %v469 = vpop.f32.mrb[0].mxu0
    %v470 = vadd.f32 0.0, %v469
    %v471 = vpop.f32.mrb[0].mxu0
    %v472 = vpop.f32.mrb[0].mxu0
    %v473 = vadd.f32 0.0, %v472
    %v474 = vpop.f32.mrb[0].mxu0
    %475 = vmatprep.mubr.bf16.mxu0 0
    %476 = vmatmul.mubr.bf16.gmra.mrb[0].mxu0 %v422
    %v477 = vpop.f32.mrb[0].mxu0
    %v478 = vadd.f32 0.0, %v477
    %v479 = vpop.f32.mrb[0].mxu0
    %v480 = vpop.f32.mrb[0].mxu0
    %v481 = vadd.f32 0.0, %v480
    %v482 = vpop.f32.mrb[0].mxu0
    %483 = vmatprep.mubr.bf16.mxu0 0
    %484 = vmatmul.mubr.bf16.gmra.mrb[0].mxu0 %v425
    %v485 = vpop.f32.mrb[0].mxu0
    %v486 = vadd.f32 0.0, %v485
    %v487 = vpop.f32.mrb[0].mxu0
    %v488 = vpop.f32.mrb[0].mxu0
    %v489 = vadd.f32 0.0, %v488
    %v490 = vpop.f32.mrb[0].mxu0
    %491 = vdwg.mxu0
    %v492 = vpack.c.bf16 %v465, %v462
    %v493 = vpack.c.bf16 %v473, %v470
    %v494 = vpack.c.bf16 %v481, %v478
    %v495 = vpack.c.bf16 %v489, %v486
    %v496 = vld [vmem:[#allocation2 + $0x48] sm:$0xf]
    %v497 = vld [vmem:[#allocation2 + $0x4c] sm:$0xf]
    %v498 = vld [vmem:[#allocation2 + $0x50] sm:$0xf]
    %v499 = vld [vmem:[#allocation2 + $0x54] sm:$0xf]
    %v500 = vld [vmem:[#allocation2 + $0x58] sm:$0xf]
    %v501 = vld [vmem:[#allocation2 + $0x5c] sm:$0xf]
    %v502 = vld [vmem:[#allocation2 + $0x60] sm:$0xf]
    %v503 = vld [vmem:[#allocation2 + $0x64] sm:$0xf]
    %v512 = vunpack.c.l.b16 %v496
    %v513 = vunpack.c.l.b16 %v497
    %v514 = vunpack.c.l.b16 %v498
    %v515 = vunpack.c.l.b16 %v499
    %v516 = vunpack.c.l.b16 %v500
    %v517 = vunpack.c.l.b16 %v501
    %v518 = vunpack.c.l.b16 %v502
    %v519 = vunpack.c.l.b16 %v503
    %v520 = vpack.c.b16 %v513, %v512
    %v521 = vpack.c.b16 %v515, %v514
    %v522 = vpack.c.b16 %v517, %v516
    %v523 = vpack.c.b16 %v519, %v518
    %528 = vmatprep.subr.bf16.mxu0 0
    %529 = vmatpush1.bf16.msra.mxu0 %v520
    %530 = vmatprep.subr.bf16.mxu0 0
    %531 = vmatpush1.bf16.msra.mxu0 %v521
    %532 = vmatprep.subr.bf16.mxu0 0
    %533 = vmatpush1.bf16.msra.mxu0 %v522
    %534 = vmatprep.subr.bf16.mxu0 0
    %535 = vmatpush1.bf16.msra.mxu0 %v523
    %536 = vmatprep.subr.bf16.mxu0 0
    %537 = vmatpush1.bf16.msra.mxu0 0
    %538 = vmatprep.subr.bf16.mxu0 0
    %539 = vmatpush1.bf16.msra.mxu0 0
    %540 = vmatprep.subr.bf16.mxu0 0
    %541 = vmatpush1.bf16.msra.mxu0 0
    %542 = vmatprep.subr.bf16.mxu0 0
    %543 = vmatpush1.bf16.msra.mxu0 0
    %544 = vmatprep.subr.bf16.mxu0 0
    %545 = vmatpush1.bf16.msra.mxu0 0
    %546 = vmatprep.subr.bf16.mxu0 0
    %547 = vmatpush1.bf16.msra.mxu0 0
    %548 = vmatprep.subr.bf16.mxu0 0
    %549 = vmatpush1.bf16.msra.mxu0 0
    %550 = vmatprep.subr.bf16.mxu0 0
    %551 = vmatpush1.bf16.msra.mxu0 0
    %552 = vmatprep.subr.bf16.mxu0 0
    %553 = vmatpush1.bf16.msra.mxu0 0
    %554 = vmatprep.subr.bf16.mxu0 0
    %555 = vmatpush1.bf16.msra.mxu0 0
    %556 = vmatprep.subr.bf16.mxu0 0
    %557 = vmatpush1.bf16.msra.mxu0 0
    %558 = vmatprep.subr.bf16.mxu0 0
    %559 = vmatpush1.bf16.msra.mxu0 0
    %560 = vmatprep.mubr.bf16.mxu0 0
    %561 = vmatmul.mubr.bf16.gmra.mrb[0].mxu0 %v416
    %v562 = vpop.f32.mrb[0].mxu0
    %v563 = vadd.f32 0.0, %v562
    %v564 = vpop.f32.mrb[0].mxu0
    %v565 = vpop.f32.mrb[0].mxu0
    %v566 = vadd.f32 0.0, %v565
    %v567 = vpop.f32.mrb[0].mxu0
    %568 = vmatprep.mubr.bf16.mxu0 0
    %569 = vmatmul.mubr.bf16.gmra.mrb[0].mxu0 %v419
    %v570 = vpop.f32.mrb[0].mxu0
    %v571 = vadd.f32 0.0, %v570
    %v572 = vpop.f32.mrb[0].mxu0
    %v573 = vpop.f32.mrb[0].mxu0
    %v574 = vadd.f32 0.0, %v573
    %v575 = vpop.f32.mrb[0].mxu0
    %576 = vmatprep.mubr.bf16.mxu0 0
    %577 = vmatmul.mubr.bf16.gmra.mrb[0].mxu0 %v422
    %v578 = vpop.f32.mrb[0].mxu0
    %v579 = vadd.f32 0.0, %v578
    %v580 = vpop.f32.mrb[0].mxu0
    %v581 = vpop.f32.mrb[0].mxu0
    %v582 = vadd.f32 0.0, %v581
    %v583 = vpop.f32.mrb[0].mxu0
    %584 = vmatprep.mubr.bf16.mxu0 0
    %585 = vmatmul.mubr.bf16.gmra.mrb[0].mxu0 %v425
    %v586 = vpop.f32.mrb[0].mxu0
    %v587 = vadd.f32 0.0, %v586
    %v588 = vpop.f32.mrb[0].mxu0
    %v589 = vpop.f32.mrb[0].mxu0
    %v590 = vadd.f32 0.0, %v589
    %v591 = vpop.f32.mrb[0].mxu0
    %592 = vdwg.mxu0
    %v601 = vunpack.c.l.b16 %v370
    %v602 = vunpack.c.l.b16 %v371
    %v603 = vunpack.c.l.b16 %v372
    %v604 = vunpack.c.l.b16 %v373
    %v605 = vunpack.c.l.b16 %v374
    %v606 = vunpack.c.l.b16 %v375
    %v607 = vunpack.c.l.b16 %v376
    %v608 = vunpack.c.l.b16 %v377
    %v609 = vpack.c.b16 %v602, %v601
    %v610 = vpack.c.b16 %v604, %v603
    %v611 = vpack.c.b16 %v606, %v605
    %v612 = vpack.c.b16 %v608, %v607
    %v614 = vsel %vm414, %v609, 0
    %v617 = vsel %vm414, %v610, 0
    %v620 = vsel %vm414, %v611, 0
    %v623 = vsel %vm414, %v612, 0
    %625 = vmatprep.subr.bf16.mxu0 0
    %626 = vmatpush1.bf16.msra.mxu0 %v492
    %627 = vmatprep.subr.bf16.mxu0 0
    %628 = vmatpush1.bf16.msra.mxu0 %v493
    %629 = vmatprep.subr.bf16.mxu0 0
    %630 = vmatpush1.bf16.msra.mxu0 %v494
    %631 = vmatprep.subr.bf16.mxu0 0
    %632 = vmatpush1.bf16.msra.mxu0 %v495
    %633 = vmatprep.subr.bf16.mxu0 0
    %634 = vmatpush1.bf16.msra.mxu0 0
    %635 = vmatprep.subr.bf16.mxu0 0
    %636 = vmatpush1.bf16.msra.mxu0 0
    %637 = vmatprep.subr.bf16.mxu0 0
    %638 = vmatpush1.bf16.msra.mxu0 0
    %639 = vmatprep.subr.bf16.mxu0 0
    %640 = vmatpush1.bf16.msra.mxu0 0
    %641 = vmatprep.subr.bf16.mxu0 0
    %642 = vmatpush1.bf16.msra.mxu0 0
    %643 = vmatprep.subr.bf16.mxu0 0
    %644 = vmatpush1.bf16.msra.mxu0 0
    %645 = vmatprep.subr.bf16.mxu0 0
    %646 = vmatpush1.bf16.msra.mxu0 0
    %647 = vmatprep.subr.bf16.mxu0 0
    %648 = vmatpush1.bf16.msra.mxu0 0
    %649 = vmatprep.subr.bf16.mxu0 0
    %650 = vmatpush1.bf16.msra.mxu0 0
    %651 = vmatprep.subr.bf16.mxu0 0
    %652 = vmatpush1.bf16.msra.mxu0 0
    %653 = vmatprep.subr.bf16.mxu0 0
    %654 = vmatpush1.bf16.msra.mxu0 0
    %655 = vmatprep.subr.bf16.mxu0 0
    %656 = vmatpush1.bf16.msra.mxu0 0
    %657 = vmatprep.mubr.bf16.mxu0 0
    %658 = vmatmul.mubr.bf16.gmra.mrb[0].mxu0 %v614
    %v659 = vpop.f32.mrb[0].mxu0
    %v660 = vadd.f32 %v563, %v659
    %v661 = vpop.f32.mrb[0].mxu0
    %v662 = vpop.f32.mrb[0].mxu0
    %v663 = vadd.f32 %v566, %v662
    %v664 = vpop.f32.mrb[0].mxu0
    %665 = vmatprep.mubr.bf16.mxu0 0
    %666 = vmatmul.mubr.bf16.gmra.mrb[0].mxu0 %v617
    %v667 = vpop.f32.mrb[0].mxu0
    %v668 = vadd.f32 %v571, %v667
    %v669 = vpop.f32.mrb[0].mxu0
    %v670 = vpop.f32.mrb[0].mxu0
    %v671 = vadd.f32 %v574, %v670
    %v672 = vpop.f32.mrb[0].mxu0
    %673 = vmatprep.mubr.bf16.mxu0 0
    %674 = vmatmul.mubr.bf16.gmra.mrb[0].mxu0 %v620
    %v675 = vpop.f32.mrb[0].mxu0
    %v676 = vadd.f32 %v579, %v675
    %v677 = vpop.f32.mrb[0].mxu0
    %v678 = vpop.f32.mrb[0].mxu0
    %v679 = vadd.f32 %v582, %v678
    %v680 = vpop.f32.mrb[0].mxu0
    %681 = vmatprep.mubr.bf16.mxu0 0
    %682 = vmatmul.mubr.bf16.gmra.mrb[0].mxu0 %v623
    %v683 = vpop.f32.mrb[0].mxu0
    %v684 = vadd.f32 %v587, %v683
    %v685 = vpop.f32.mrb[0].mxu0
    %v686 = vpop.f32.mrb[0].mxu0
    %v687 = vadd.f32 %v590, %v686
    %v688 = vpop.f32.mrb[0].mxu0
    %689 = vdwg.mxu0
    %v690 = vld [vmem:[#allocation4 + $0x18] sm:$0x1]
    %v691 = vlaneseq
    %v692 = vshrl.u32 %v691, 7
    %v693 = vsub.s32 0, %v692
    %v694 = vrot.slane %v690, %v693
    %v695 = vadd.f32 %v660, %v694
    %v696 = vadd.f32 %v663, %v694
    %v697 = vadd.f32 %v668, %v694
    %v698 = vadd.f32 %v671, %v694
    %v699 = vadd.f32 %v676, %v694
    %v700 = vadd.f32 %v679, %v694
    %v701 = vadd.f32 %v684, %v694
    %v702 = vadd.f32 %v687, %v694
    %v703 = vmax.f32 %v695, 0.0
    %v704 = vmax.f32 %v696, 0.0
    %v705 = vmax.f32 %v697, 0.0
    %v706 = vmax.f32 %v698, 0.0
    %v707 = vmax.f32 %v699, 0.0
    %v708 = vmax.f32 %v700, 0.0
    %v709 = vmax.f32 %v701, 0.0
    %v710 = vmax.f32 %v702, 0.0
    %s711 = scalar_lea.vmem %s1, 32
    %v712 = vld [vmem:[%s711] sm:$0xf]
    %v713 = vld [vmem:[%s711 + $0x4] sm:$0xf]
    %v714 = vld [vmem:[%s711 + $0x8] sm:$0xf]
    %v715 = vld [vmem:[%s711 + $0xc] sm:$0xf]
    %v716 = vld [vmem:[%s711 + $0x10] sm:$0xf]
    %v717 = vld [vmem:[%s711 + $0x14] sm:$0xf]
    %v718 = vld [vmem:[%s711 + $0x18] sm:$0xf]
    %v719 = vld [vmem:[%s711 + $0x1c] sm:$0xf]
    %v720 = vld [vmem:[#allocation2 + $0x68] sm:$0xf]
    %v721 = vld [vmem:[#allocation2 + $0x6c] sm:$0xf]
    %v722 = vld [vmem:[#allocation2 + $0x70] sm:$0xf]
    %v723 = vld [vmem:[#allocation2 + $0x74] sm:$0xf]
    %v724 = vpack.c.bf16 %v704, %v703
    %v725 = vpack.c.bf16 %v706, %v705
    %v726 = vpack.c.bf16 %v708, %v707
    %v727 = vpack.c.bf16 %v710, %v709
    %v732 = vunpack.c.l.b16 %v720
    %v733 = vunpack.c.l.b16 %v721
    %v734 = vunpack.c.l.b16 %v722
    %v735 = vunpack.c.l.b16 %v723
    %v736 = vpack.c.b16 %v733, %v732
    %v737 = vpack.c.b16 %v735, %v734
    %v741 = vsel %vm182, %v724, 0
    %v744 = vsel %vm182, %v725, 0
    %v747 = vsel %vm182, %v726, 0
    %v750 = vsel %vm182, %v727, 0
    %752 = vmatprep.subr.bf16.mxu0 0
    %753 = vmatpush1.bf16.msra.mxu0 %v736
    %754 = vmatprep.subr.bf16.mxu0 0
    %755 = vmatpush1.bf16.msra.mxu0 %v737
    %756 = vmatprep.subr.bf16.mxu0 0
    %757 = vmatpush1.bf16.msra.mxu0 0
    %758 = vmatprep.subr.bf16.mxu0 0
    %759 = vmatpush1.bf16.msra.mxu0 0
    %760 = vmatprep.subr.bf16.mxu0 0
    %761 = vmatpush1.bf16.msra.mxu0 0
    %762 = vmatprep.subr.bf16.mxu0 0
    %763 = vmatpush1.bf16.msra.mxu0 0
    %764 = vmatprep.subr.bf16.mxu0 0
    %765 = vmatpush1.bf16.msra.mxu0 0
    %766 = vmatprep.subr.bf16.mxu0 0
    %767 = vmatpush1.bf16.msra.mxu0 0
    %768 = vmatprep.subr.bf16.mxu0 0
    %769 = vmatpush1.bf16.msra.mxu0 0
    %770 = vmatprep.subr.bf16.mxu0 0
    %771 = vmatpush1.bf16.msra.mxu0 0
    %772 = vmatprep.subr.bf16.mxu0 0
    %773 = vmatpush1.bf16.msra.mxu0 0
    %774 = vmatprep.subr.bf16.mxu0 0
    %775 = vmatpush1.bf16.msra.mxu0 0
    %776 = vmatprep.subr.bf16.mxu0 0
    %777 = vmatpush1.bf16.msra.mxu0 0
    %778 = vmatprep.subr.bf16.mxu0 0
    %779 = vmatpush1.bf16.msra.mxu0 0
    %780 = vmatprep.subr.bf16.mxu0 0
    %781 = vmatpush1.bf16.msra.mxu0 0
    %782 = vmatprep.subr.bf16.mxu0 0
    %783 = vmatpush1.bf16.msra.mxu0 0
    %784 = vmatprep.mubr.bf16.mxu0 0
    %785 = vmatmul.mubr.bf16.gmra.mrb[0].mxu0 %v741
    %v786 = vpop.f32.mrb[0].mxu0
    %v787 = vadd.f32 0.0, %v786
    %v788 = vpop.f32.mrb[0].mxu0
    %v789 = vpop.f32.mrb[0].mxu0
    %v790 = vadd.f32 0.0, %v789
    %v791 = vpop.f32.mrb[0].mxu0
    %792 = vmatprep.mubr.bf16.mxu0 0
    %793 = vmatmul.mubr.bf16.gmra.mrb[0].mxu0 %v744
    %v794 = vpop.f32.mrb[0].mxu0
    %v795 = vadd.f32 0.0, %v794
    %v796 = vpop.f32.mrb[0].mxu0
    %v797 = vpop.f32.mrb[0].mxu0
    %v798 = vadd.f32 0.0, %v797
    %v799 = vpop.f32.mrb[0].mxu0
    %800 = vmatprep.mubr.bf16.mxu0 0
    %801 = vmatmul.mubr.bf16.gmra.mrb[0].mxu0 %v747
    %v802 = vpop.f32.mrb[0].mxu0
    %v803 = vadd.f32 0.0, %v802
    %v804 = vpop.f32.mrb[0].mxu0
    %v805 = vpop.f32.mrb[0].mxu0
    %v806 = vadd.f32 0.0, %v805
    %v807 = vpop.f32.mrb[0].mxu0
    %808 = vmatprep.mubr.bf16.mxu0 0
    %809 = vmatmul.mubr.bf16.gmra.mrb[0].mxu0 %v750
    %v810 = vpop.f32.mrb[0].mxu0
    %v811 = vadd.f32 0.0, %v810
    %v812 = vpop.f32.mrb[0].mxu0
    %v813 = vpop.f32.mrb[0].mxu0
    %v814 = vadd.f32 0.0, %v813
    %v815 = vpop.f32.mrb[0].mxu0
    %816 = vdwg.mxu0
    %v817 = vpack.c.bf16 %v790, %v787
    %v818 = vpack.c.bf16 %v798, %v795
    %v819 = vpack.c.bf16 %v806, %v803
    %v820 = vpack.c.bf16 %v814, %v811
    %v821 = vld [vmem:[#allocation2 + $0x78] sm:$0xf]
    %v822 = vld [vmem:[#allocation2 + $0x7c] sm:$0xf]
    %v823 = vld [vmem:[#allocation2 + $0x80] sm:$0xf]
    %v824 = vld [vmem:[#allocation2 + $0x84] sm:$0xf]
    %v829 = vunpack.c.l.b16 %v821
    %v830 = vunpack.c.l.b16 %v822
    %v831 = vunpack.c.l.b16 %v823
    %v832 = vunpack.c.l.b16 %v824
    %v833 = vpack.c.b16 %v830, %v829
    %v834 = vpack.c.b16 %v832, %v831
    %837 = vmatprep.subr.bf16.mxu0 0
    %838 = vmatpush1.bf16.msra.mxu0 %v833
    %839 = vmatprep.subr.bf16.mxu0 0
    %840 = vmatpush1.bf16.msra.mxu0 %v834
    %841 = vmatprep.subr.bf16.mxu0 0
    %842 = vmatpush1.bf16.msra.mxu0 0
    %843 = vmatprep.subr.bf16.mxu0 0
    %844 = vmatpush1.bf16.msra.mxu0 0
    %845 = vmatprep.subr.bf16.mxu0 0
    %846 = vmatpush1.bf16.msra.mxu0 0
    %847 = vmatprep.subr.bf16.mxu0 0
    %848 = vmatpush1.bf16.msra.mxu0 0
    %849 = vmatprep.subr.bf16.mxu0 0
    %850 = vmatpush1.bf16.msra.mxu0 0
    %851 = vmatprep.subr.bf16.mxu0 0
    %852 = vmatpush1.bf16.msra.mxu0 0
    %853 = vmatprep.subr.bf16.mxu0 0
    %854 = vmatpush1.bf16.msra.mxu0 0
    %855 = vmatprep.subr.bf16.mxu0 0
    %856 = vmatpush1.bf16.msra.mxu0 0
    %857 = vmatprep.subr.bf16.mxu0 0
    %858 = vmatpush1.bf16.msra.mxu0 0
    %859 = vmatprep.subr.bf16.mxu0 0
    %860 = vmatpush1.bf16.msra.mxu0 0
    %861 = vmatprep.subr.bf16.mxu0 0
    %862 = vmatpush1.bf16.msra.mxu0 0
    %863 = vmatprep.subr.bf16.mxu0 0
    %864 = vmatpush1.bf16.msra.mxu0 0
    %865 = vmatprep.subr.bf16.mxu0 0
    %866 = vmatpush1.bf16.msra.mxu0 0
    %867 = vmatprep.subr.bf16.mxu0 0
    %868 = vmatpush1.bf16.msra.mxu0 0
    %869 = vmatprep.mubr.bf16.mxu0 0
    %870 = vmatmul.mubr.bf16.gmra.mrb[0].mxu0 %v741
    %v871 = vpop.f32.mrb[0].mxu0
    %v872 = vadd.f32 0.0, %v871
    %v873 = vpop.f32.mrb[0].mxu0
    %v874 = vpop.f32.mrb[0].mxu0
    %v875 = vadd.f32 0.0, %v874
    %v876 = vpop.f32.mrb[0].mxu0
    %877 = vmatprep.mubr.bf16.mxu0 0
    %878 = vmatmul.mubr.bf16.gmra.mrb[0].mxu0 %v744
    %v879 = vpop.f32.mrb[0].mxu0
    %v880 = vadd.f32 0.0, %v879
    %v881 = vpop.f32.mrb[0].mxu0
    %v882 = vpop.f32.mrb[0].mxu0
    %v883 = vadd.f32 0.0, %v882
    %v884 = vpop.f32.mrb[0].mxu0
    %885 = vmatprep.mubr.bf16.mxu0 0
    %886 = vmatmul.mubr.bf16.gmra.mrb[0].mxu0 %v747
    %v887 = vpop.f32.mrb[0].mxu0
    %v888 = vadd.f32 0.0, %v887
    %v889 = vpop.f32.mrb[0].mxu0
    %v890 = vpop.f32.mrb[0].mxu0
    %v891 = vadd.f32 0.0, %v890
    %v892 = vpop.f32.mrb[0].mxu0
    %893 = vmatprep.mubr.bf16.mxu0 0
    %894 = vmatmul.mubr.bf16.gmra.mrb[0].mxu0 %v750
    %v895 = vpop.f32.mrb[0].mxu0
    %v896 = vadd.f32 0.0, %v895
    %v897 = vpop.f32.mrb[0].mxu0
    %v898 = vpop.f32.mrb[0].mxu0
    %v899 = vadd.f32 0.0, %v898
    %v900 = vpop.f32.mrb[0].mxu0
    %901 = vdwg.mxu0
    %v910 = vunpack.c.l.b16 %v712
    %v911 = vunpack.c.l.b16 %v713
    %v912 = vunpack.c.l.b16 %v714
    %v913 = vunpack.c.l.b16 %v715
    %v914 = vunpack.c.l.b16 %v716
    %v915 = vunpack.c.l.b16 %v717
    %v916 = vunpack.c.l.b16 %v718
    %v917 = vunpack.c.l.b16 %v719
    %v918 = vpack.c.b16 %v911, %v910
    %v919 = vpack.c.b16 %v913, %v912
    %v920 = vpack.c.b16 %v915, %v914
    %v921 = vpack.c.b16 %v917, %v916
    %v923 = vsel %vm414, %v918, 0
    %v926 = vsel %vm414, %v919, 0
    %v929 = vsel %vm414, %v920, 0
    %v932 = vsel %vm414, %v921, 0
    %934 = vmatprep.subr.bf16.mxu0 0
    %935 = vmatpush1.bf16.msra.mxu0 %v817
    %936 = vmatprep.subr.bf16.mxu0 0
    %937 = vmatpush1.bf16.msra.mxu0 %v818
    %938 = vmatprep.subr.bf16.mxu0 0
    %939 = vmatpush1.bf16.msra.mxu0 %v819
    %940 = vmatprep.subr.bf16.mxu0 0
    %941 = vmatpush1.bf16.msra.mxu0 %v820
    %942 = vmatprep.subr.bf16.mxu0 0
    %943 = vmatpush1.bf16.msra.mxu0 0
    %944 = vmatprep.subr.bf16.mxu0 0
    %945 = vmatpush1.bf16.msra.mxu0 0
    %946 = vmatprep.subr.bf16.mxu0 0
    %947 = vmatpush1.bf16.msra.mxu0 0
    %948 = vmatprep.subr.bf16.mxu0 0
    %949 = vmatpush1.bf16.msra.mxu0 0
    %950 = vmatprep.subr.bf16.mxu0 0
    %951 = vmatpush1.bf16.msra.mxu0 0
    %952 = vmatprep.subr.bf16.mxu0 0
    %953 = vmatpush1.bf16.msra.mxu0 0
    %954 = vmatprep.subr.bf16.mxu0 0
    %955 = vmatpush1.bf16.msra.mxu0 0
    %956 = vmatprep.subr.bf16.mxu0 0
    %957 = vmatpush1.bf16.msra.mxu0 0
    %958 = vmatprep.subr.bf16.mxu0 0
    %959 = vmatpush1.bf16.msra.mxu0 0
    %960 = vmatprep.subr.bf16.mxu0 0
    %961 = vmatpush1.bf16.msra.mxu0 0
    %962 = vmatprep.subr.bf16.mxu0 0
    %963 = vmatpush1.bf16.msra.mxu0 0
    %964 = vmatprep.subr.bf16.mxu0 0
    %965 = vmatpush1.bf16.msra.mxu0 0
    %966 = vmatprep.mubr.bf16.mxu0 0
    %967 = vmatmul.mubr.bf16.gmra.mrb[0].mxu0 %v923
    %v968 = vpop.f32.mrb[0].mxu0
    %v969 = vadd.f32 %v872, %v968
    %v970 = vpop.f32.mrb[0].mxu0
    %v971 = vpop.f32.mrb[0].mxu0
    %v972 = vadd.f32 %v875, %v971
    %v973 = vpop.f32.mrb[0].mxu0
    %974 = vmatprep.mubr.bf16.mxu0 0
    %975 = vmatmul.mubr.bf16.gmra.mrb[0].mxu0 %v926
    %v976 = vpop.f32.mrb[0].mxu0
    %v977 = vadd.f32 %v880, %v976
    %v978 = vpop.f32.mrb[0].mxu0
    %v979 = vpop.f32.mrb[0].mxu0
    %v980 = vadd.f32 %v883, %v979
    %v981 = vpop.f32.mrb[0].mxu0
    %982 = vmatprep.mubr.bf16.mxu0 0
    %983 = vmatmul.mubr.bf16.gmra.mrb[0].mxu0 %v929
    %v984 = vpop.f32.mrb[0].mxu0
    %v985 = vadd.f32 %v888, %v984
    %v986 = vpop.f32.mrb[0].mxu0
    %v987 = vpop.f32.mrb[0].mxu0
    %v988 = vadd.f32 %v891, %v987
    %v989 = vpop.f32.mrb[0].mxu0
    %990 = vmatprep.mubr.bf16.mxu0 0
    %991 = vmatmul.mubr.bf16.gmra.mrb[0].mxu0 %v932
    %v992 = vpop.f32.mrb[0].mxu0
    %v993 = vadd.f32 %v896, %v992
    %v994 = vpop.f32.mrb[0].mxu0
    %v995 = vpop.f32.mrb[0].mxu0
    %v996 = vadd.f32 %v899, %v995
    %v997 = vpop.f32.mrb[0].mxu0
    %998 = vdwg.mxu0
    %v999 = vld [vmem:[#allocation4 + $0x20] sm:$0x1]
    %v1000 = vlaneseq
    %v1001 = vshrl.u32 %v1000, 7
    %v1002 = vsub.s32 0, %v1001
    %v1003 = vrot.slane %v999, %v1002
    %v1004 = vadd.f32 %v969, %v1003
    %v1005 = vadd.f32 %v972, %v1003
    %v1006 = vadd.f32 %v977, %v1003
    %v1007 = vadd.f32 %v980, %v1003
    %v1008 = vadd.f32 %v985, %v1003
    %v1009 = vadd.f32 %v988, %v1003
    %v1010 = vadd.f32 %v993, %v1003
    %v1011 = vadd.f32 %v996, %v1003
    %v1012 = vmax.f32 %v1004, 0.0
    %v1013 = vmax.f32 %v1005, 0.0
    %v1014 = vmax.f32 %v1006, 0.0
    %v1015 = vmax.f32 %v1007, 0.0
    %v1016 = vmax.f32 %v1008, 0.0
    %v1017 = vmax.f32 %v1009, 0.0
    %v1018 = vmax.f32 %v1010, 0.0
    %v1019 = vmax.f32 %v1011, 0.0
    %v1020 = vld [vmem:[#allocation2 + $0x88] sm:$0xf]
    %v1021 = vld [vmem:[#allocation2 + $0x8c] sm:$0xf]
    %v1022 = vld [vmem:[#allocation2 + $0x90] sm:$0xf]
    %v1023 = vld [vmem:[#allocation2 + $0x94] sm:$0xf]
    %v1024 = vpack.c.bf16 %v1013, %v1012
    %v1025 = vpack.c.bf16 %v1015, %v1014
    %v1026 = vpack.c.bf16 %v1017, %v1016
    %v1027 = vpack.c.bf16 %v1019, %v1018
    %v1028 = vld [vmem:[#allocation4 + $0x28] sm:$0x1]
    %v1029 = vlaneseq
    %v1030 = vshrl.u32 %v1029, 7
    %v1031 = vsub.s32 0, %v1030
    %v1032 = vrot.slane %v1028, %v1031
    %v1037 = vunpack.c.l.b16 %v1020
    %v1038 = vunpack.c.l.b16 %v1021
    %v1039 = vunpack.c.l.b16 %v1022
    %v1040 = vunpack.c.l.b16 %v1023
    %v1041 = vpack.c.b16 %v1038, %v1037
    %v1042 = vpack.c.b16 %v1040, %v1039
    %v1046 = vsel %vm182, %v1024, 0
    %v1049 = vsel %vm182, %v1025, 0
    %v1052 = vsel %vm182, %v1026, 0
    %v1055 = vsel %vm182, %v1027, 0
    %1057 = vmatprep.subr.bf16.mxu0 0
    %1058 = vmatpush1.bf16.msra.mxu0 %v1041
    %1059 = vmatprep.subr.bf16.mxu0 0
    %1060 = vmatpush1.bf16.msra.mxu0 %v1042
    %1061 = vmatprep.subr.bf16.mxu0 0
    %1062 = vmatpush1.bf16.msra.mxu0 0
    %1063 = vmatprep.subr.bf16.mxu0 0
    %1064 = vmatpush1.bf16.msra.mxu0 0
    %1065 = vmatprep.subr.bf16.mxu0 0
    %1066 = vmatpush1.bf16.msra.mxu0 0
    %1067 = vmatprep.subr.bf16.mxu0 0
    %1068 = vmatpush1.bf16.msra.mxu0 0
    %1069 = vmatprep.subr.bf16.mxu0 0
    %1070 = vmatpush1.bf16.msra.mxu0 0
    %1071 = vmatprep.subr.bf16.mxu0 0
    %1072 = vmatpush1.bf16.msra.mxu0 0
    %1073 = vmatprep.subr.bf16.mxu0 0
    %1074 = vmatpush1.bf16.msra.mxu0 0
    %1075 = vmatprep.subr.bf16.mxu0 0
    %1076 = vmatpush1.bf16.msra.mxu0 0
    %1077 = vmatprep.subr.bf16.mxu0 0
    %1078 = vmatpush1.bf16.msra.mxu0 0
    %1079 = vmatprep.subr.bf16.mxu0 0
    %1080 = vmatpush1.bf16.msra.mxu0 0
    %1081 = vmatprep.subr.bf16.mxu0 0
    %1082 = vmatpush1.bf16.msra.mxu0 0
    %1083 = vmatprep.subr.bf16.mxu0 0
    %1084 = vmatpush1.bf16.msra.mxu0 0
    %1085 = vmatprep.subr.bf16.mxu0 0
    %1086 = vmatpush1.bf16.msra.mxu0 0
    %1087 = vmatprep.subr.bf16.mxu0 0
    %1088 = vmatpush1.bf16.msra.mxu0 0
    %1089 = vmatprep.mubr.bf16.mxu0 0
    %1090 = vmatmul.mubr.bf16.gmra.mrb[0].mxu0 %v1046
    %v1091 = vpop.f32.mrb[0].mxu0
    %v1092 = vadd.f32 %v1032, %v1091
    %v1093 = vpop.f32.mrb[0].mxu0
    %v1094 = vpop.f32.mrb[0].mxu0
    %v1095 = vadd.f32 %v1032, %v1094
    %v1096 = vpop.f32.mrb[0].mxu0
    %1097 = vmatprep.mubr.bf16.mxu0 0
    %1098 = vmatmul.mubr.bf16.gmra.mrb[0].mxu0 %v1049
    %v1099 = vpop.f32.mrb[0].mxu0
    %v1100 = vadd.f32 %v1032, %v1099
    %v1101 = vpop.f32.mrb[0].mxu0
    %v1102 = vpop.f32.mrb[0].mxu0
    %v1103 = vadd.f32 %v1032, %v1102
    %v1104 = vpop.f32.mrb[0].mxu0
    %1105 = vmatprep.mubr.bf16.mxu0 0
    %1106 = vmatmul.mubr.bf16.gmra.mrb[0].mxu0 %v1052
    %v1107 = vpop.f32.mrb[0].mxu0
    %v1108 = vadd.f32 %v1032, %v1107
    %v1109 = vpop.f32.mrb[0].mxu0
    %v1110 = vpop.f32.mrb[0].mxu0
    %v1111 = vadd.f32 %v1032, %v1110
    %v1112 = vpop.f32.mrb[0].mxu0
    %1113 = vmatprep.mubr.bf16.mxu0 0
    %1114 = vmatmul.mubr.bf16.gmra.mrb[0].mxu0 %v1055
    %v1115 = vpop.f32.mrb[0].mxu0
    %v1116 = vadd.f32 %v1032, %v1115
    %v1117 = vpop.f32.mrb[0].mxu0
    %v1118 = vpop.f32.mrb[0].mxu0
    %v1119 = vadd.f32 %v1032, %v1118
    %v1120 = vpop.f32.mrb[0].mxu0
    %1121 = vdwg.mxu0
    %v1122 = vmax.f32 %v1092, 0.0
    %v1123 = vmax.f32 %v1095, 0.0
    %v1124 = vmax.f32 %v1100, 0.0
    %v1125 = vmax.f32 %v1103, 0.0
    %v1126 = vmax.f32 %v1108, 0.0
    %v1127 = vmax.f32 %v1111, 0.0
    %v1128 = vmax.f32 %v1116, 0.0
    %v1129 = vmax.f32 %v1119, 0.0
    %v1130 = vld [vmem:[#allocation2 + $0x98] sm:$0xf]
    %v1131 = vld [vmem:[#allocation2 + $0x9c] sm:$0xf]
    %v1132 = vld [vmem:[#allocation2 + $0xa0] sm:$0xf]
    %v1133 = vld [vmem:[#allocation2 + $0xa4] sm:$0xf]
    %v1134 = vpack.c.bf16 %v1123, %v1122
    %v1135 = vpack.c.bf16 %v1125, %v1124
    %v1136 = vpack.c.bf16 %v1127, %v1126
    %v1137 = vpack.c.bf16 %v1129, %v1128
    %v1138 = vld [vmem:[#allocation4 + $0x30] sm:$0x1]
    %v1139 = vlaneseq
    %v1140 = vshrl.u32 %v1139, 7
    %v1141 = vsub.s32 0, %v1140
    %v1142 = vrot.slane %v1138, %v1141
    %v1147 = vunpack.c.l.b16 %v1130
    %v1148 = vunpack.c.l.b16 %v1131
    %v1149 = vunpack.c.l.b16 %v1132
    %v1150 = vunpack.c.l.b16 %v1133
    %v1151 = vpack.c.b16 %v1148, %v1147
    %v1152 = vpack.c.b16 %v1150, %v1149
    %v1156 = vsel %vm182, %v1134, 0
    %v1159 = vsel %vm182, %v1135, 0
    %v1162 = vsel %vm182, %v1136, 0
    %v1165 = vsel %vm182, %v1137, 0
    %1167 = vmatprep.subr.bf16.mxu0 0
    %1168 = vmatpush1.bf16.msra.mxu0 %v1151
    %1169 = vmatprep.subr.bf16.mxu0 0
    %1170 = vmatpush1.bf16.msra.mxu0 %v1152
    %1171 = vmatprep.subr.bf16.mxu0 0
    %1172 = vmatpush1.bf16.msra.mxu0 0
    %1173 = vmatprep.subr.bf16.mxu0 0
    %1174 = vmatpush1.bf16.msra.mxu0 0
    %1175 = vmatprep.subr.bf16.mxu0 0
    %1176 = vmatpush1.bf16.msra.mxu0 0
    %1177 = vmatprep.subr.bf16.mxu0 0
    %1178 = vmatpush1.bf16.msra.mxu0 0
    %1179 = vmatprep.subr.bf16.mxu0 0
    %1180 = vmatpush1.bf16.msra.mxu0 0
    %1181 = vmatprep.subr.bf16.mxu0 0
    %1182 = vmatpush1.bf16.msra.mxu0 0
    %1183 = vmatprep.subr.bf16.mxu0 0
    %1184 = vmatpush1.bf16.msra.mxu0 0
    %1185 = vmatprep.subr.bf16.mxu0 0
    %1186 = vmatpush1.bf16.msra.mxu0 0
    %1187 = vmatprep.subr.bf16.mxu0 0
    %1188 = vmatpush1.bf16.msra.mxu0 0
    %1189 = vmatprep.subr.bf16.mxu0 0
    %1190 = vmatpush1.bf16.msra.mxu0 0
    %1191 = vmatprep.subr.bf16.mxu0 0
    %1192 = vmatpush1.bf16.msra.mxu0 0
    %1193 = vmatprep.subr.bf16.mxu0 0
    %1194 = vmatpush1.bf16.msra.mxu0 0
    %1195 = vmatprep.subr.bf16.mxu0 0
    %1196 = vmatpush1.bf16.msra.mxu0 0
    %1197 = vmatprep.subr.bf16.mxu0 0
    %1198 = vmatpush1.bf16.msra.mxu0 0
    %1199 = vmatprep.mubr.bf16.mxu0 0
    %1200 = vmatmul.mubr.bf16.gmra.mrb[0].mxu0 %v1156
    %v1201 = vpop.f32.mrb[0].mxu0
    %v1202 = vadd.f32 %v1142, %v1201
    %v1203 = vpop.f32.mrb[0].mxu0
    %v1204 = vpop.f32.mrb[0].mxu0
    %v1205 = vadd.f32 %v1142, %v1204
    %v1206 = vpop.f32.mrb[0].mxu0
    %1207 = vmatprep.mubr.bf16.mxu0 0
    %1208 = vmatmul.mubr.bf16.gmra.mrb[0].mxu0 %v1159
    %v1209 = vpop.f32.mrb[0].mxu0
    %v1210 = vadd.f32 %v1142, %v1209
    %v1211 = vpop.f32.mrb[0].mxu0
    %v1212 = vpop.f32.mrb[0].mxu0
    %v1213 = vadd.f32 %v1142, %v1212
    %v1214 = vpop.f32.mrb[0].mxu0
    %1215 = vmatprep.mubr.bf16.mxu0 0
    %1216 = vmatmul.mubr.bf16.gmra.mrb[0].mxu0 %v1162
    %v1217 = vpop.f32.mrb[0].mxu0
    %v1218 = vadd.f32 %v1142, %v1217
    %v1219 = vpop.f32.mrb[0].mxu0
    %v1220 = vpop.f32.mrb[0].mxu0
    %v1221 = vadd.f32 %v1142, %v1220
    %v1222 = vpop.f32.mrb[0].mxu0
    %1223 = vmatprep.mubr.bf16.mxu0 0
    %1224 = vmatmul.mubr.bf16.gmra.mrb[0].mxu0 %v1165
    %v1225 = vpop.f32.mrb[0].mxu0
    %v1226 = vadd.f32 %v1142, %v1225
    %v1227 = vpop.f32.mrb[0].mxu0
    %v1228 = vpop.f32.mrb[0].mxu0
    %v1229 = vadd.f32 %v1142, %v1228
    %v1230 = vpop.f32.mrb[0].mxu0
    %1231 = vdwg.mxu0
    %vm1232 = vcmask 64512
    %v1233 = vsel %vm1232, %v1202, -inf
    %1234 = vmax.xlane.f32.xlu0 %v1233
    %v1235 = vpop.xlane.xlu0 %1234
    %v1236 = vsel %vm1232, %v1205, -inf
    %1237 = vmax.xlane.f32.xlu0 %v1236
    %v1238 = vpop.xlane.xlu0 %1237
    %v1239 = vsel %vm1232, %v1210, -inf
    %1240 = vmax.xlane.f32.xlu0 %v1239
    %v1241 = vpop.xlane.xlu0 %1240
    %v1242 = vsel %vm1232, %v1213, -inf
    %1243 = vmax.xlane.f32.xlu0 %v1242
    %v1244 = vpop.xlane.xlu0 %1243
    %v1245 = vsel %vm1232, %v1218, -inf
    %1246 = vmax.xlane.f32.xlu0 %v1245
    %v1247 = vpop.xlane.xlu0 %1246
    %v1248 = vsel %vm1232, %v1221, -inf
    %1249 = vmax.xlane.f32.xlu0 %v1248
    %v1250 = vpop.xlane.xlu0 %1249
    %v1251 = vsel %vm1232, %v1226, -inf
    %1252 = vmax.xlane.f32.xlu0 %v1251
    %v1253 = vpop.xlane.xlu0 %1252
    %v1254 = vsel %vm1232, %v1229, -inf
    %1255 = vmax.xlane.f32.xlu0 %v1254
    %v1256 = vpop.xlane.xlu0 %1255
    %v1257 = vsub.f32 %v1202, %v1235
    %v1258 = vsub.f32 %v1205, %v1238
    %v1259 = vsub.f32 %v1210, %v1241
    %v1260 = vsub.f32 %v1213, %v1244
    %v1261 = vsub.f32 %v1218, %v1247
    %v1262 = vsub.f32 %v1221, %v1250
    %v1263 = vsub.f32 %v1226, %v1253
    %v1264 = vsub.f32 %v1229, %v1256
    %v1265 = vmul.f32 %v1257, 1.442695
    %v1266 = vpow.pop %v1265
    %v1267 = vmul.f32 %v1258, 1.442695
    %v1268 = vpow.pop %v1267
    %v1269 = vmul.f32 %v1259, 1.442695
    %v1270 = vpow.pop %v1269
    %v1271 = vmul.f32 %v1260, 1.442695
    %v1272 = vpow.pop %v1271
    %v1273 = vmul.f32 %v1261, 1.442695
    %v1274 = vpow.pop %v1273
    %v1275 = vmul.f32 %v1262, 1.442695
    %v1276 = vpow.pop %v1275
    %v1277 = vmul.f32 %v1263, 1.442695
    %v1278 = vpow.pop %v1277
    %v1279 = vmul.f32 %v1264, 1.442695
    %v1280 = vpow.pop %v1279
    %v1281 = vsel %vm1232, %v1266, 0.0
    %1282 = vadd.xlane.f32.xlu0 %v1281
    %v1283 = vpop.xlane.xlu0 %1282
    %v1284 = vsel %vm1232, %v1268, 0.0
    %1285 = vadd.xlane.f32.xlu0 %v1284
    %v1286 = vpop.xlane.xlu0 %1285
    %v1287 = vsel %vm1232, %v1270, 0.0
    %1288 = vadd.xlane.f32.xlu0 %v1287
    %v1289 = vpop.xlane.xlu0 %1288
    %v1290 = vsel %vm1232, %v1272, 0.0
    %1291 = vadd.xlane.f32.xlu0 %v1290
    %v1292 = vpop.xlane.xlu0 %1291
    %v1293 = vsel %vm1232, %v1274, 0.0
    %1294 = vadd.xlane.f32.xlu0 %v1293
    %v1295 = vpop.xlane.xlu0 %1294
    %v1296 = vsel %vm1232, %v1276, 0.0
    %1297 = vadd.xlane.f32.xlu0 %v1296
    %v1298 = vpop.xlane.xlu0 %1297
    %v1299 = vsel %vm1232, %v1278, 0.0
    %1300 = vadd.xlane.f32.xlu0 %v1299
    %v1301 = vpop.xlane.xlu0 %1300
    %v1302 = vsel %vm1232, %v1280, 0.0
    %1303 = vadd.xlane.f32.xlu0 %v1302
    %v1304 = vpop.xlane.xlu0 %1303
    %v1305 = vlog2.pop %v1283
    %v1306 = vmul.f32 %v1305, 0.6931472
    %v1307 = vlog2.pop %v1286
    %v1308 = vmul.f32 %v1307, 0.6931472
    %v1309 = vlog2.pop %v1289
    %v1310 = vmul.f32 %v1309, 0.6931472
    %v1311 = vlog2.pop %v1292
    %v1312 = vmul.f32 %v1311, 0.6931472
    %v1313 = vlog2.pop %v1295
    %v1314 = vmul.f32 %v1313, 0.6931472
    %v1315 = vlog2.pop %v1298
    %v1316 = vmul.f32 %v1315, 0.6931472
    %v1317 = vlog2.pop %v1301
    %v1318 = vmul.f32 %v1317, 0.6931472
    %v1319 = vlog2.pop %v1304
    %v1320 = vmul.f32 %v1319, 0.6931472
    %v1321 = vsub.f32 %v1257, %v1306
    %v1322 = vsub.f32 %v1258, %v1308
    %v1323 = vsub.f32 %v1259, %v1310
    %v1324 = vsub.f32 %v1260, %v1312
    %v1325 = vsub.f32 %v1261, %v1314
    %v1326 = vsub.f32 %v1262, %v1316
    %v1327 = vsub.f32 %v1263, %v1318
    %v1328 = vsub.f32 %v1264, %v1320
    %1329 = vst.msk [vmem:[%s4] sm:$0xff] %vm1232, %v1321
    %1330 = vst.msk [vmem:[%s4 + $0x8] sm:$0xff] %vm1232, %v1322
    %1331 = vst.msk [vmem:[%s4 + $0x10] sm:$0xff] %vm1232, %v1323
    %1332 = vst.msk [vmem:[%s4 + $0x18] sm:$0xff] %vm1232, %v1324
    %1333 = vst.msk [vmem:[%s4 + $0x20] sm:$0xff] %vm1232, %v1325
    %1334 = vst.msk [vmem:[%s4 + $0x28] sm:$0xff] %vm1232, %v1326
    %1335 = vst.msk [vmem:[%s4 + $0x30] sm:$0xff] %vm1232, %v1327
    %1336 = vst.msk [vmem:[%s4 + $0x38] sm:$0xff] %vm1232, %v1328
    // Predicated region
    $region26: #{tpu_custom_call.1} parent=1 // pred_check
      _
    $region27: #{tpu_custom_call.1} parent=1 // pred_check_branch
      %1338 = sbr.rel (0) target = $region29
    $region28: #{tpu_custom_call.1} parent=1 // pred_region
      _
    $region29: #{tpu_custom_call.1} parent=1 // pred_fallthru
      _
    // Predicated region
    $region30: #{tpu_custom_call.1} parent=1 // pred_check
      _
    $region31: #{tpu_custom_call.1} parent=1 // pred_check_branch
      %1340 = sbr.rel (0) target = $region33
    $region32: #{tpu_custom_call.1} parent=1 // pred_region
      _
    $region33: #{tpu_custom_call.1} parent=1 // pred_fallthru
      _
    %1341 = vsyncpa [#allocation3], 1
    %1342 = vsyncpa [#allocation5], 1

</llo_original>
